<compile_context>
chip_gen: v6e
topology: v6e:2x2x1
jax: 0.10.0
libtpu: 0.0.40
codegen_flags: <defaults>
</compile_context>

<pallas_src>
import math
import functools

import jax
import jax.numpy as jnp
from jax.experimental import pallas as pl
from jax.experimental.pallas import tpu as pltpu


_VMEM_LIMIT = 32 * 1024 * 1024   # safe on v5e/v6e (128 MiB) and v7x (64 MiB physical)


def _mosaic(n_axes):
    return pltpu.CompilerParams(
        dimension_semantics=("parallel",) * n_axes,
        vmem_limit_bytes=_VMEM_LIMIT)


def _pick_row_tile(m, target=512):
    """Largest multiple-of-8 row tile <= target that evenly divides m."""
    tile = m
    t = min(target, m)
    t -= t % 8
    while t >= 8:
        if m % t == 0:
            tile = t
            break
        t -= 8
    # Prefer >=2 grid steps so the row axis can shard across TensorCores (v7x has 2 TCs).
    if tile == m and m >= 16 and (m // 2) % 8 == 0:
        tile = m // 2
    return tile


# ----------------------------- Pallas kernels ------------------------------

def layernorm_kernel(x_ref, g_ref, b_ref, o_ref):
    x = x_ref[...]
    mu = jnp.mean(x, axis=-1, keepdims=True)
    var = jnp.mean(jnp.square(x - mu), axis=-1, keepdims=True)
    o_ref[...] = (x - mu) * jax.lax.rsqrt(var + 1e-12) * g_ref[...] + b_ref[...]


def linear_kernel(x_ref, w_ref, b_ref, o_ref):
    # y = x @ w + b ; bf16 operands on the MXU, f32 accumulation.
    x = x_ref[...].astype(jnp.bfloat16)
    o_ref[...] = jnp.dot(x, w_ref[...], preferred_element_type=jnp.float32) + b_ref[...]


def oproj_add_ln_kernel(ctx_ref, res_ref, w_ref, b_ref, g_ref, beta_ref, o_ref):
    # attention output projection + residual add + post-LayerNorm, fused.
    y = jnp.dot(ctx_ref[...].astype(jnp.bfloat16), w_ref[...],
                preferred_element_type=jnp.float32) + b_ref[...]
    x = y + res_ref[...]
    mu = jnp.mean(x, axis=-1, keepdims=True)
    var = jnp.mean(jnp.square(x - mu), axis=-1, keepdims=True)
    o_ref[...] = (x - mu) * jax.lax.rsqrt(var + 1e-12) * g_ref[...] + beta_ref[...]


def ffn_add_ln_kernel(x_ref, w1_ref, b1_ref, w2_ref, b2_ref, g_ref, beta_ref, o_ref):
    # GELU-FFN + residual add + post-LayerNorm, fused.  GELU kept in f32 (VPU/EUP).
    x = x_ref[...]
    h = jnp.dot(x.astype(jnp.bfloat16), w1_ref[...],
                preferred_element_type=jnp.float32) + b1_ref[...]
    # TODO(synk): HF DistilBERT uses exact erf-GELU; tanh-approx GELU used here.
    h = 0.5 * h * (1.0 + jnp.tanh(0.7978845608028654 * (h + 0.044715 * h * h * h)))
    y = jnp.dot(h.astype(jnp.bfloat16), w2_ref[...],
                preferred_element_type=jnp.float32) + b2_ref[...]
    z = y + x
    mu = jnp.mean(z, axis=-1, keepdims=True)
    var = jnp.mean(jnp.square(z - mu), axis=-1, keepdims=True)
    o_ref[...] = (z - mu) * jax.lax.rsqrt(var + 1e-12) * g_ref[...] + beta_ref[...]


def attention_kernel(qkv_ref, bias_ref, o_ref, *, heads, dh, hidden, scale):
    # One batch element per grid step.  qkv block is (1, S, 3H) lane-dense (H last);
    # heads are static lane slices, so the output is one dense (S, H) store.
    qkv = qkv_ref[0]            # (S, 3H) f32
    bias = bias_ref[0]          # (1, S)  additive mask bias (0 keep / -1e9 pad)
    ctx = []
    for h in range(heads):
        q = (qkv[:, h * dh:(h + 1) * dh] * scale).astype(jnp.bfloat16)
        k = qkv[:, hidden + h * dh: hidden + (h + 1) * dh].astype(jnp.bfloat16)
        v = qkv[:, 2 * hidden + h * dh: 2 * hidden + (h + 1) * dh].astype(jnp.bfloat16)
        s = jax.lax.dot_general(q, k, (((1,), (1,)), ((), ())),
                                preferred_element_type=jnp.float32)    # (S, S)
        s = s + bias                                                   # additive mask
        m = jnp.max(s, axis=-1, keepdims=True)
        p = jnp.exp(s - m)                                             # f32 softmax
        p = p * pl.reciprocal(jnp.sum(p, axis=-1, keepdims=True), approx=True)
        ctx.append(jnp.dot(p.astype(jnp.bfloat16), v,
                           preferred_element_type=jnp.float32))        # (S, dh)
    o_ref[0] = jnp.concatenate(ctx, axis=-1)                           # dense (S, H) store


def classifier_kernel(x_ref, w1_ref, b1_ref, w2_ref, b2_ref, o_ref):
    h = jnp.dot(x_ref[...].astype(jnp.bfloat16), w1_ref[...],
                preferred_element_type=jnp.float32) + b1_ref[...]
    h = jnp.maximum(h, 0.0)     # ReLU; Dropout(0.3) is identity at inference
    o_ref[...] = jnp.dot(h.astype(jnp.bfloat16), w2_ref[...],
                         preferred_element_type=jnp.float32) + b2_ref[...]


# ----------------------------- Pallas wrappers ------------------------------

def pallas_layernorm(x, g, b):
    M, H = x.shape
    tm = _pick_row_tile(M)
    return pl.pallas_call(
        layernorm_kernel,
        grid=(M // tm,),
        in_specs=[pl.BlockSpec((tm, H), lambda i: (i, 0)),
                  pl.BlockSpec((1, H), lambda i: (0, 0)),
                  pl.BlockSpec((1, H), lambda i: (0, 0))],
        out_specs=pl.BlockSpec((tm, H), lambda i: (i, 0)),
        out_shape=jax.ShapeDtypeStruct((M, H), jnp.float32),
        compiler_params=_mosaic(1),
    )(x, g.reshape(1, H), b.reshape(1, H))


def pallas_linear(x, w, b):
    M, K = x.shape
    N = w.shape[1]
    tm = _pick_row_tile(M)
    return pl.pallas_call(
        linear_kernel,
        grid=(M // tm,),
        in_specs=[pl.BlockSpec((tm, K), lambda i: (i, 0)),
                  pl.BlockSpec((K, N), lambda i: (0, 0)),    # weight stays VMEM-resident
                  pl.BlockSpec((1, N), lambda i: (0, 0))],
        out_specs=pl.BlockSpec((tm, N), lambda i: (i, 0)),
        out_shape=jax.ShapeDtypeStruct((M, N), jnp.float32),
        compiler_params=_mosaic(1),
    )(x, w, b.reshape(1, N))


def pallas_oproj_add_ln(ctx, res, w, b, g, beta):
    M, H = ctx.shape
    tm = _pick_row_tile(M)
    row = pl.BlockSpec((tm, H), lambda i: (i, 0))
    vec = pl.BlockSpec((1, H), lambda i: (0, 0))
    return pl.pallas_call(
        oproj_add_ln_kernel,
        grid=(M // tm,),
        in_specs=[row, row, pl.BlockSpec((H, H), lambda i: (0, 0)), vec, vec, vec],
        out_specs=row,
        out_shape=jax.ShapeDtypeStruct((M, H), jnp.float32),
        compiler_params=_mosaic(1),
    )(ctx, res, w, b.reshape(1, H), g.reshape(1, H), beta.reshape(1, H))


def pallas_ffn_add_ln(x, w1, b1, w2, b2, g, beta):
    M, H = x.shape
    F = w1.shape[1]
    # Row tile capped at 512 so (tile x F) f32 intermediate + bf16 weights + double
    # buffering fits comfortably inside v7x's 64 MiB VMEM at real DistilBERT sizes.
    tm = _pick_row_tile(M, target=512)
    row = pl.BlockSpec((tm, H), lambda i: (i, 0))
    vec_h = pl.BlockSpec((1, H), lambda i: (0, 0))
    return pl.pallas_call(
        ffn_add_ln_kernel,
        grid=(M // tm,),
        in_specs=[row,
                  pl.BlockSpec((H, F), lambda i: (0, 0)),
                  pl.BlockSpec((1, F), lambda i: (0, 0)),
                  pl.BlockSpec((F, H), lambda i: (0, 0)),
                  vec_h, vec_h, vec_h],
        out_specs=row,
        out_shape=jax.ShapeDtypeStruct((M, H), jnp.float32),
        compiler_params=_mosaic(1),
    )(x, w1, b1.reshape(1, F), w2, b2.reshape(1, H), g.reshape(1, H), beta.reshape(1, H))


def pallas_attention(qkv, mask_bias, *, heads, dh, hidden, scale):
    B, S, three_h = qkv.shape
    # TODO(synk): flash-style KV tiling (online softmax) for S >= 512 so the (S, S)
    # score tensor never fully materializes in VMEM.
    return pl.pallas_call(
        functools.partial(attention_kernel, heads=heads, dh=dh, hidden=hidden, scale=scale),
        grid=(B,),
        in_specs=[pl.BlockSpec((1, S, three_h), lambda b: (b, 0, 0)),
                  pl.BlockSpec((1, 1, S), lambda b: (b, 0, 0))],
        out_specs=pl.BlockSpec((1, S, hidden), lambda b: (b, 0, 0)),
        out_shape=jax.ShapeDtypeStruct((B, S, hidden), jnp.float32),
        compiler_params=_mosaic(1),
    )(qkv, mask_bias)


def pallas_classifier(x, w1, b1, w2, b2):
    # (B, H) -> (B, classes): tiny, launch-bound; single un-gridded fused call.
    B = x.shape[0]
    N = w2.shape[1]
    return pl.pallas_call(
        classifier_kernel,
        out_shape=jax.ShapeDtypeStruct((B, N), jnp.float32),
    )(x, w1, b1.reshape(1, -1), w2, b2.reshape(1, -1))


# ----------------------------- Model definition -----------------------------

def init_params(key, *, vocab, max_pos, hidden, heads, ffn, layers, cls_mid, classes):
    del heads  # head count is passed statically to the forward fn

    def dense(k, fan_in, fan_out):
        # weights stored in bf16 (MXU-native); biases / LN params stay f32
        return (0.02 * jax.random.normal(k, (fan_in, fan_out), jnp.float32)).astype(jnp.bfloat16)

    keys = iter(jax.random.split(key, 4 + 4 * layers))
    params = {
        'word_emb': 0.02 * jax.random.normal(next(keys), (vocab, hidden), jnp.float32),
        'pos_emb': 0.02 * jax.random.normal(next(keys), (max_pos, hidden), jnp.float32),
        'emb_ln_g': jnp.ones((hidden,), jnp.float32),
        'emb_ln_b': jnp.zeros((hidden,), jnp.float32),
        'layers': [],
    }
    for _ in range(layers):
        params['layers'].append({
            # fused Q|K|V projection weight
            'qkv_w': dense(next(keys), hidden, 3 * hidden),
            'qkv_b': jnp.zeros((3 * hidden,), jnp.float32),
            'o_w': dense(next(keys), hidden, hidden),
            'o_b': jnp.zeros((hidden,), jnp.float32),
            'sa_ln_g': jnp.ones((hidden,), jnp.float32),
            'sa_ln_b': jnp.zeros((hidden,), jnp.float32),
            'ffn_w1': dense(next(keys), hidden, ffn),
            'ffn_b1': jnp.zeros((ffn,), jnp.float32),
            'ffn_w2': dense(next(keys), ffn, hidden),
            'ffn_b2': jnp.zeros((hidden,), jnp.float32),
            'out_ln_g': jnp.ones((hidden,), jnp.float32),
            'out_ln_b': jnp.zeros((hidden,), jnp.float32),
        })
    params['c1_w'] = dense(next(keys), hidden, cls_mid)
    params['c1_b'] = jnp.zeros((cls_mid,), jnp.float32)
    params['c2_w'] = dense(next(keys), cls_mid, classes)
    params['c2_b'] = jnp.zeros((classes,), jnp.float32)
    return params


def bert_mlp_forward(params, input_ids, attention_mask, *, heads):
    B, S = input_ids.shape
    H = params['word_emb'].shape[1]
    dh = H // heads
    scale = 1.0 / math.sqrt(dh)

    # Embeddings (gather is XLA glue) + embedding LayerNorm (Pallas, row-tiled).
    x = jnp.take(params['word_emb'], input_ids, axis=0) + params['pos_emb'][:S][None, :, :]
    x2d = pallas_layernorm(x.reshape(B * S, H), params['emb_ln_g'], params['emb_ln_b'])

    # Additive attention-mask bias (0 = keep, -1e9 = pad), computed once per batch.
    # Padding is trailing-only here; a fully-masked row would degrade to uniform attention.
    mask_bias = ((1.0 - attention_mask.astype(jnp.float32)) * -1e9).reshape(B, 1, S)

    for lp in params['layers']:
        # fused QKV projection: one (H, 3H) matmul instead of three separate ones
        qkv = pallas_linear(x2d, lp['qkv_w'], lp['qkv_b'])                     # (B*S, 3H)
        ctx = pallas_attention(qkv.reshape(B, S, 3 * H), mask_bias,
                               heads=heads, dh=dh, hidden=H, scale=scale)      # (B, S, H)
        # fused: output projection + residual add + post-LayerNorm
        x2d = pallas_oproj_add_ln(ctx.reshape(B * S, H), x2d,
                                  lp['o_w'], lp['o_b'], lp['sa_ln_g'], lp['sa_ln_b'])
        # fused: GELU-FFN + residual add + post-LayerNorm
        x2d = pallas_ffn_add_ln(x2d, lp['ffn_w1'], lp['ffn_b1'],
                                lp['ffn_w2'], lp['ffn_b2'],
                                lp['out_ln_g'], lp['out_ln_b'])

    # outputs.last_hidden_state[:, 0, :]  ->  CLS embedding
    cls_embed = x2d.reshape(B, S, H)[:, 0, :]

    # classifier: Linear(H, mid) -> ReLU -> Dropout(0.3)(identity) -> Linear(mid, classes)
    return pallas_classifier(cls_embed, params['c1_w'], params['c1_b'],
                             params['c2_w'], params['c2_b'])


# ----------------------------------- main -----------------------------------

if __name__ == "__main__":
    B, S = 2, 8
    VOCAB, MAX_POS = 100, 16
    HIDDEN, HEADS, FFN, LAYERS = 64, 2, 128, 2
    CLS_MID, CLASSES = 256, 10

    key = jax.random.PRNGKey(0)
    k_param, k_ids = jax.random.split(key)
    params = init_params(k_param, vocab=VOCAB, max_pos=MAX_POS, hidden=HIDDEN,
                         heads=HEADS, ffn=FFN, layers=LAYERS,
                         cls_mid=CLS_MID, classes=CLASSES)

    input_ids = jax.random.randint(k_ids, (B, S), 0, VOCAB, dtype=jnp.int32)
    # second sequence has two padding positions at the end
    attention_mask = jnp.array([[1, 1, 1, 1, 1, 1, 1, 1],
                                [1, 1, 1, 1, 1, 1, 0, 0]], dtype=jnp.int32)

    fwd = jax.jit(functools.partial(bert_mlp_forward, heads=HEADS))
    logits = fwd(params, input_ids, attention_mask)
    jax.block_until_ready(logits)
    assert logits.shape == (B, CLASSES) and logits.dtype == jnp.float32
    assert bool(jnp.all(jnp.isfinite(logits)))
    print("KERNEL_OK")
</pallas_src>

<mosaic_0001>
module attributes {stable_mosaic.version = 11 : i64} {
  func.func @attention_kernel(%arg0: i32, %arg1: memref<1x8x192xf32, #tpu.memory_space<vmem>>, %arg2: memref<1x1x8xf32, #tpu.memory_space<vmem>>, %arg3: memref<1x8x64xf32, #tpu.memory_space<vmem>>) attributes {dimension_semantics = [#tpu.dimension_semantics<parallel>], iteration_bounds = array<i64: 2>, scalar_prefetch = 0 : i64, scratch_operands = 0 : i64, tpu.core_type = #tpu.core_type<tc>, window_params = [{transform_indices = @transform_0, window_bounds = array<i64: 1, 8, 192>}, {transform_indices = @transform_1, window_bounds = array<i64: 1, 1, 8>}, {transform_indices = @transform_2, window_bounds = array<i64: 1, 8, 64>}]} {
    %c0 = arith.constant 0 : index
    %c0_0 = arith.constant 0 : index
    %c0_1 = arith.constant 0 : index
    %0 = vector.load %arg1[%c0, %c0_0, %c0_1] : memref<1x8x192xf32, #tpu.memory_space<vmem>>, vector<1x8x192xf32>
    %1 = vector.shape_cast %0 : vector<1x8x192xf32> to vector<8x192xf32>
    %c0_2 = arith.constant 0 : index
    %c0_3 = arith.constant 0 : index
    %c0_4 = arith.constant 0 : index
    %2 = vector.load %arg2[%c0_2, %c0_3, %c0_4] : memref<1x1x8xf32, #tpu.memory_space<vmem>>, vector<1x1x8xf32>
    %3 = vector.shape_cast %2 : vector<1x1x8xf32> to vector<1x8xf32>
    %4 = vector.extract_strided_slice %1 {offsets = [0, 0], sizes = [8, 32], strides = [1, 1]} : vector<8x192xf32> to vector<8x32xf32>
    %cst = arith.constant 0.176776692 : f32
    %5 = vector.broadcast %cst : f32 to vector<8x32xf32>
    %6 = arith.mulf %4, %5 : vector<8x32xf32>
    %7 = arith.truncf %6 : vector<8x32xf32> to vector<8x32xbf16>
    %8 = vector.extract_strided_slice %1 {offsets = [0, 64], sizes = [8, 32], strides = [1, 1]} : vector<8x192xf32> to vector<8x32xf32>
    %9 = arith.truncf %8 : vector<8x32xf32> to vector<8x32xbf16>
    %10 = vector.extract_strided_slice %1 {offsets = [0, 128], sizes = [8, 32], strides = [1, 1]} : vector<8x192xf32> to vector<8x32xf32>
    %11 = arith.truncf %10 : vector<8x32xf32> to vector<8x32xbf16>
    %cst_5 = arith.constant dense<0.000000e+00> : vector<8x8xf32>
    %12 = tpu.matmul %7, %9, %cst_5 {dimension_numbers = #tpu.dot_dimension_numbers<[1], [1], [0], [0], [0, 0, 1, 0], [], []>} : vector<8x32xbf16>, vector<8x32xbf16>, vector<8x8xf32> -> vector<8x8xf32>
    %13 = vector.broadcast %3 : vector<1x8xf32> to vector<8x8xf32>
    %14 = arith.addf %12, %13 : vector<8x8xf32>
    %cst_6 = arith.constant dense<0xFF800000> : vector<8xf32>
    %15 = vector.multi_reduction <maximumf>, %14, %cst_6 [1] : vector<8x8xf32> to vector<8xf32>
    %16 = vector.shape_cast %15 : vector<8xf32> to vector<8x1xf32>
    %17 = vector.broadcast %16 : vector<8x1xf32> to vector<8x8xf32>
    %18 = arith.subf %14, %17 : vector<8x8xf32>
    %19 = math.exp %18 : vector<8x8xf32>
    %cst_7 = arith.constant dense<0.000000e+00> : vector<8xf32>
    %20 = vector.multi_reduction <add>, %19, %cst_7 [1] : vector<8x8xf32> to vector<8xf32>
    %21 = vector.shape_cast %20 : vector<8xf32> to vector<8x1xf32>
    %22 = tpu.reciprocal %21 {approx = true} : vector<8x1xf32> -> vector<8x1xf32>
    %23 = vector.broadcast %22 : vector<8x1xf32> to vector<8x8xf32>
    %24 = arith.mulf %19, %23 : vector<8x8xf32>
    %25 = arith.truncf %24 : vector<8x8xf32> to vector<8x8xbf16>
    %cst_8 = arith.constant dense<0.000000e+00> : vector<8x32xf32>
    %26 = tpu.matmul %25, %11, %cst_8 {dimension_numbers = #tpu.dot_dimension_numbers<[1], [0], [0], [1], [0, 0, 1, 1], [], []>} : vector<8x8xbf16>, vector<8x32xbf16>, vector<8x32xf32> -> vector<8x32xf32>
    %27 = vector.extract_strided_slice %1 {offsets = [0, 32], sizes = [8, 32], strides = [1, 1]} : vector<8x192xf32> to vector<8x32xf32>
    %cst_9 = arith.constant 0.176776692 : f32
    %28 = vector.broadcast %cst_9 : f32 to vector<8x32xf32>
    %29 = arith.mulf %27, %28 : vector<8x32xf32>
    %30 = arith.truncf %29 : vector<8x32xf32> to vector<8x32xbf16>
    %31 = vector.extract_strided_slice %1 {offsets = [0, 96], sizes = [8, 32], strides = [1, 1]} : vector<8x192xf32> to vector<8x32xf32>
    %32 = arith.truncf %31 : vector<8x32xf32> to vector<8x32xbf16>
    %33 = vector.extract_strided_slice %1 {offsets = [0, 160], sizes = [8, 32], strides = [1, 1]} : vector<8x192xf32> to vector<8x32xf32>
    %34 = arith.truncf %33 : vector<8x32xf32> to vector<8x32xbf16>
    %cst_10 = arith.constant dense<0.000000e+00> : vector<8x8xf32>
    %35 = tpu.matmul %30, %32, %cst_10 {dimension_numbers = #tpu.dot_dimension_numbers<[1], [1], [0], [0], [0, 0, 1, 0], [], []>} : vector<8x32xbf16>, vector<8x32xbf16>, vector<8x8xf32> -> vector<8x8xf32>
    %36 = vector.broadcast %3 : vector<1x8xf32> to vector<8x8xf32>
    %37 = arith.addf %35, %36 : vector<8x8xf32>
    %cst_11 = arith.constant dense<0xFF800000> : vector<8xf32>
    %38 = vector.multi_reduction <maximumf>, %37, %cst_11 [1] : vector<8x8xf32> to vector<8xf32>
    %39 = vector.shape_cast %38 : vector<8xf32> to vector<8x1xf32>
    %40 = vector.broadcast %39 : vector<8x1xf32> to vector<8x8xf32>
    %41 = arith.subf %37, %40 : vector<8x8xf32>
    %42 = math.exp %41 : vector<8x8xf32>
    %cst_12 = arith.constant dense<0.000000e+00> : vector<8xf32>
    %43 = vector.multi_reduction <add>, %42, %cst_12 [1] : vector<8x8xf32> to vector<8xf32>
    %44 = vector.shape_cast %43 : vector<8xf32> to vector<8x1xf32>
    %45 = tpu.reciprocal %44 {approx = true} : vector<8x1xf32> -> vector<8x1xf32>
    %46 = vector.broadcast %45 : vector<8x1xf32> to vector<8x8xf32>
    %47 = arith.mulf %42, %46 : vector<8x8xf32>
    %48 = arith.truncf %47 : vector<8x8xf32> to vector<8x8xbf16>
    %cst_13 = arith.constant dense<0.000000e+00> : vector<8x32xf32>
    %49 = tpu.matmul %48, %34, %cst_13 {dimension_numbers = #tpu.dot_dimension_numbers<[1], [0], [0], [1], [0, 0, 1, 1], [], []>} : vector<8x8xbf16>, vector<8x32xbf16>, vector<8x32xf32> -> vector<8x32xf32>
    %50 = tpu.concatenate %26, %49 in 1 : vector<8x32xf32>, vector<8x32xf32> -> vector<8x64xf32>
    %c0_14 = arith.constant 0 : index
    %c0_15 = arith.constant 0 : index
    %c0_16 = arith.constant 0 : index
    %51 = vector.load %arg3[%c0_14, %c0_15, %c0_16] : memref<1x8x64xf32, #tpu.memory_space<vmem>>, vector<1x8x64xf32>
    %52 = vector.shape_cast %51 : vector<1x8x64xf32> to vector<8x64xf32>
    %53 = vector.shape_cast %50 : vector<8x64xf32> to vector<1x8x64xf32>
    tpu.vector_store %arg3[%c0_14, %c0_15, %c0_16], %53 {strides = array<i32>} : memref<1x8x64xf32, #tpu.memory_space<vmem>>, vector<1x8x64xf32>,
    return
  }
  func.func @transform_0(%arg0: i32) -> (i32, i32, i32) {
    %c0_i32 = arith.constant 0 : i32
    %c0_i32_0 = arith.constant 0 : i32
    %c0_i32_1 = arith.constant 0 : i32
    return %arg0, %c0_i32, %c0_i32_0 : i32, i32, i32
  }
  func.func @transform_1(%arg0: i32) -> (i32, i32, i32) {
    %c0_i32 = arith.constant 0 : i32
    %c0_i32_0 = arith.constant 0 : i32
    %c0_i32_1 = arith.constant 0 : i32
    return %arg0, %c0_i32, %c0_i32_0 : i32, i32, i32
  }
  func.func @transform_2(%arg0: i32) -> (i32, i32, i32) {
    %c0_i32 = arith.constant 0 : i32
    %c0_i32_0 = arith.constant 0 : i32
    %c0_i32_1 = arith.constant 0 : i32
    return %arg0, %c0_i32, %c0_i32_0 : i32, i32, i32
  }
}

module attributes {stable_mosaic.version = 11 : i64} {
  func.func @linear_kernel(%arg0: i32, %arg1: memref<8x64xf32, #tpu.memory_space<vmem>>, %arg2: memref<64x192xbf16, #tpu.memory_space<vmem>>, %arg3: memref<1x192xf32, #tpu.memory_space<vmem>>, %arg4: memref<8x192xf32, #tpu.memory_space<vmem>>) attributes {dimension_semantics = [#tpu.dimension_semantics<parallel>], iteration_bounds = array<i64: 2>, scalar_prefetch = 0 : i64, scratch_operands = 0 : i64, tpu.core_type = #tpu.core_type<tc>, window_params = [{transform_indices = @transform_0, window_bounds = array<i64: 8, 64>}, {pipeline_mode = #tpu.pipeline_mode<synchronous>, transform_indices = @transform_1, window_bounds = array<i64: 64, 192>}, {pipeline_mode = #tpu.pipeline_mode<synchronous>, transform_indices = @transform_2, window_bounds = array<i64: 1, 192>}, {transform_indices = @transform_3, window_bounds = array<i64: 8, 192>}]} {
    %c0 = arith.constant 0 : index
    %c0_0 = arith.constant 0 : index
    %0 = vector.load %arg1[%c0, %c0_0] : memref<8x64xf32, #tpu.memory_space<vmem>>, vector<8x64xf32>
    %1 = arith.truncf %0 : vector<8x64xf32> to vector<8x64xbf16>
    %c0_1 = arith.constant 0 : index
    %c0_2 = arith.constant 0 : index
    %2 = vector.load %arg2[%c0_1, %c0_2] : memref<64x192xbf16, #tpu.memory_space<vmem>>, vector<64x192xbf16>
    %cst = arith.constant dense<0.000000e+00> : vector<8x192xf32>
    %3 = tpu.matmul %1, %2, %cst {dimension_numbers = #tpu.dot_dimension_numbers<[1], [0], [0], [1], [0, 0, 1, 1], [], []>} : vector<8x64xbf16>, vector<64x192xbf16>, vector<8x192xf32> -> vector<8x192xf32>
    %c0_3 = arith.constant 0 : index
    %c0_4 = arith.constant 0 : index
    %4 = vector.load %arg3[%c0_3, %c0_4] : memref<1x192xf32, #tpu.memory_space<vmem>>, vector<1x192xf32>
    %5 = vector.broadcast %4 : vector<1x192xf32> to vector<8x192xf32>
    %6 = arith.addf %3, %5 : vector<8x192xf32>
    %c0_5 = arith.constant 0 : index
    %c0_6 = arith.constant 0 : index
    %7 = vector.load %arg4[%c0_5, %c0_6] : memref<8x192xf32, #tpu.memory_space<vmem>>, vector<8x192xf32>
    tpu.vector_store %arg4[%c0_5, %c0_6], %6 {strides = array<i32>} : memref<8x192xf32, #tpu.memory_space<vmem>>, vector<8x192xf32>,
    return
  }
  func.func @transform_0(%arg0: i32) -> (i32, i32) {
    %c0_i32 = arith.constant 0 : i32
    %c0_i32_0 = arith.constant 0 : i32
    return %arg0, %c0_i32 : i32, i32
  }
  func.func @transform_1(%arg0: i32) -> (i32, i32) {
    %c0_i32 = arith.constant 0 : i32
    %c0_i32_0 = arith.constant 0 : i32
    %c0_i32_1 = arith.constant 0 : i32
    return %c0_i32, %c0_i32_0 : i32, i32
  }
  func.func @transform_2(%arg0: i32) -> (i32, i32) {
    %c0_i32 = arith.constant 0 : i32
    %c0_i32_0 = arith.constant 0 : i32
    %c0_i32_1 = arith.constant 0 : i32
    return %c0_i32, %c0_i32_0 : i32, i32
  }
  func.func @transform_3(%arg0: i32) -> (i32, i32) {
    %c0_i32 = arith.constant 0 : i32
    %c0_i32_0 = arith.constant 0 : i32
    return %arg0, %c0_i32 : i32, i32
  }
}

module attributes {stable_mosaic.version = 11 : i64} {
  func.func @layernorm_kernel(%arg0: i32, %arg1: memref<8x64xf32, #tpu.memory_space<vmem>>, %arg2: memref<1x64xf32, #tpu.memory_space<vmem>>, %arg3: memref<1x64xf32, #tpu.memory_space<vmem>>, %arg4: memref<8x64xf32, #tpu.memory_space<vmem>>) attributes {dimension_semantics = [#tpu.dimension_semantics<parallel>], iteration_bounds = array<i64: 2>, scalar_prefetch = 0 : i64, scratch_operands = 0 : i64, tpu.core_type = #tpu.core_type<tc>, window_params = [{transform_indices = @transform_0, window_bounds = array<i64: 8, 64>}, {pipeline_mode = #tpu.pipeline_mode<synchronous>, transform_indices = @transform_1, window_bounds = array<i64: 1, 64>}, {pipeline_mode = #tpu.pipeline_mode<synchronous>, transform_indices = @transform_2, window_bounds = array<i64: 1, 64>}, {transform_indices = @transform_3, window_bounds = array<i64: 8, 64>}]} {
    %c0 = arith.constant 0 : index
    %c0_0 = arith.constant 0 : index
    %0 = vector.load %arg1[%c0, %c0_0] : memref<8x64xf32, #tpu.memory_space<vmem>>, vector<8x64xf32>
    %cst = arith.constant dense<0.000000e+00> : vector<8xf32>
    %1 = vector.multi_reduction <add>, %0, %cst [1] : vector<8x64xf32> to vector<8xf32>
    %2 = vector.shape_cast %1 : vector<8xf32> to vector<8x1xf32>
    %cst_1 = arith.constant 6.400000e+01 : f32
    %3 = vector.broadcast %cst_1 : f32 to vector<8x1xf32>
    %4 = arith.divf %2, %3 : vector<8x1xf32>
    %5 = vector.broadcast %4 : vector<8x1xf32> to vector<8x64xf32>
    %6 = arith.subf %0, %5 : vector<8x64xf32>
    %7 = arith.mulf %6, %6 : vector<8x64xf32>
    %cst_2 = arith.constant dense<0.000000e+00> : vector<8xf32>
    %8 = vector.multi_reduction <add>, %7, %cst_2 [1] : vector<8x64xf32> to vector<8xf32>
    %9 = vector.shape_cast %8 : vector<8xf32> to vector<8x1xf32>
    %cst_3 = arith.constant 6.400000e+01 : f32
    %10 = vector.broadcast %cst_3 : f32 to vector<8x1xf32>
    %11 = arith.divf %9, %10 : vector<8x1xf32>
    %12 = vector.broadcast %4 : vector<8x1xf32> to vector<8x64xf32>
    %13 = arith.subf %0, %12 : vector<8x64xf32>
    %cst_4 = arith.constant 9.99999996E-13 : f32
    %14 = vector.broadcast %cst_4 : f32 to vector<8x1xf32>
    %15 = arith.addf %11, %14 : vector<8x1xf32>
    %16 = math.rsqrt %15 : vector<8x1xf32>
    %17 = vector.broadcast %16 : vector<8x1xf32> to vector<8x64xf32>
    %18 = arith.mulf %13, %17 : vector<8x64xf32>
    %c0_5 = arith.constant 0 : index
    %c0_6 = arith.constant 0 : index
    %19 = vector.load %arg2[%c0_5, %c0_6] : memref<1x64xf32, #tpu.memory_space<vmem>>, vector<1x64xf32>
    %20 = vector.broadcast %19 : vector<1x64xf32> to vector<8x64xf32>
    %21 = arith.mulf %18, %20 : vector<8x64xf32>
    %c0_7 = arith.constant 0 : index
    %c0_8 = arith.constant 0 : index
    %22 = vector.load %arg3[%c0_7, %c0_8] : memref<1x64xf32, #tpu.memory_space<vmem>>, vector<1x64xf32>
    %23 = vector.broadcast %22 : vector<1x64xf32> to vector<8x64xf32>
    %24 = arith.addf %21, %23 : vector<8x64xf32>
    %c0_9 = arith.constant 0 : index
    %c0_10 = arith.constant 0 : index
    %25 = vector.load %arg4[%c0_9, %c0_10] : memref<8x64xf32, #tpu.memory_space<vmem>>, vector<8x64xf32>
    tpu.vector_store %arg4[%c0_9, %c0_10], %24 {strides = array<i32>} : memref<8x64xf32, #tpu.memory_space<vmem>>, vector<8x64xf32>,
    return
  }
  func.func @transform_0(%arg0: i32) -> (i32, i32) {
    %c0_i32 = arith.constant 0 : i32
    %c0_i32_0 = arith.constant 0 : i32
    return %arg0, %c0_i32 : i32, i32
  }
  func.func @transform_1(%arg0: i32) -> (i32, i32) {
    %c0_i32 = arith.constant 0 : i32
    %c0_i32_0 = arith.constant 0 : i32
    %c0_i32_1 = arith.constant 0 : i32
    return %c0_i32, %c0_i32_0 : i32, i32
  }
  func.func @transform_2(%arg0: i32) -> (i32, i32) {
    %c0_i32 = arith.constant 0 : i32
    %c0_i32_0 = arith.constant 0 : i32
    %c0_i32_1 = arith.constant 0 : i32
    return %c0_i32, %c0_i32_0 : i32, i32
  }
  func.func @transform_3(%arg0: i32) -> (i32, i32) {
    %c0_i32 = arith.constant 0 : i32
    %c0_i32_0 = arith.constant 0 : i32
    return %arg0, %c0_i32 : i32, i32
  }
}

module attributes {stable_mosaic.version = 11 : i64} {
  func.func @oproj_add_ln_kernel(%arg0: i32, %arg1: memref<8x64xf32, #tpu.memory_space<vmem>>, %arg2: memref<8x64xf32, #tpu.memory_space<vmem>>, %arg3: memref<64x64xbf16, #tpu.memory_space<vmem>>, %arg4: memref<1x64xf32, #tpu.memory_space<vmem>>, %arg5: memref<1x64xf32, #tpu.memory_space<vmem>>, %arg6: memref<1x64xf32, #tpu.memory_space<vmem>>, %arg7: memref<8x64xf32, #tpu.memory_space<vmem>>) attributes {dimension_semantics = [#tpu.dimension_semantics<parallel>], iteration_bounds = array<i64: 2>, scalar_prefetch = 0 : i64, scratch_operands = 0 : i64, tpu.core_type = #tpu.core_type<tc>, window_params = [{transform_indices = @transform_0, window_bounds = array<i64: 8, 64>}, {transform_indices = @transform_1, window_bounds = array<i64: 8, 64>}, {pipeline_mode = #tpu.pipeline_mode<synchronous>, transform_indices = @transform_2, window_bounds = array<i64: 64, 64>}, {pipeline_mode = #tpu.pipeline_mode<synchronous>, transform_indices = @transform_3, window_bounds = array<i64: 1, 64>}, {pipeline_mode = #tpu.pipeline_mode<synchronous>, transform_indices = @transform_4, window_bounds = array<i64: 1, 64>}, {pipeline_mode = #tpu.pipeline_mode<synchronous>, transform_indices = @transform_5, window_bounds = array<i64: 1, 64>}, {transform_indices = @transform_6, window_bounds = array<i64: 8, 64>}]} {
    %c0 = arith.constant 0 : index
    %c0_0 = arith.constant 0 : index
    %0 = vector.load %arg1[%c0, %c0_0] : memref<8x64xf32, #tpu.memory_space<vmem>>, vector<8x64xf32>
    %1 = arith.truncf %0 : vector<8x64xf32> to vector<8x64xbf16>
    %c0_1 = arith.constant 0 : index
    %c0_2 = arith.constant 0 : index
    %2 = vector.load %arg3[%c0_1, %c0_2] : memref<64x64xbf16, #tpu.memory_space<vmem>>, vector<64x64xbf16>
    %cst = arith.constant dense<0.000000e+00> : vector<8x64xf32>
    %3 = tpu.matmul %1, %2, %cst {dimension_numbers = #tpu.dot_dimension_numbers<[1], [0], [0], [1], [0, 0, 1, 1], [], []>} : vector<8x64xbf16>, vector<64x64xbf16>, vector<8x64xf32> -> vector<8x64xf32>
    %c0_3 = arith.constant 0 : index
    %c0_4 = arith.constant 0 : index
    %4 = vector.load %arg4[%c0_3, %c0_4] : memref<1x64xf32, #tpu.memory_space<vmem>>, vector<1x64xf32>
    %5 = vector.broadcast %4 : vector<1x64xf32> to vector<8x64xf32>
    %6 = arith.addf %3, %5 : vector<8x64xf32>
    %c0_5 = arith.constant 0 : index
    %c0_6 = arith.constant 0 : index
    %7 = vector.load %arg2[%c0_5, %c0_6] : memref<8x64xf32, #tpu.memory_space<vmem>>, vector<8x64xf32>
    %8 = arith.addf %6, %7 : vector<8x64xf32>
    %cst_7 = arith.constant dense<0.000000e+00> : vector<8xf32>
    %9 = vector.multi_reduction <add>, %8, %cst_7 [1] : vector<8x64xf32> to vector<8xf32>
    %10 = vector.shape_cast %9 : vector<8xf32> to vector<8x1xf32>
    %cst_8 = arith.constant 6.400000e+01 : f32
    %11 = vector.broadcast %cst_8 : f32 to vector<8x1xf32>
    %12 = arith.divf %10, %11 : vector<8x1xf32>
    %13 = vector.broadcast %12 : vector<8x1xf32> to vector<8x64xf32>
    %14 = arith.subf %8, %13 : vector<8x64xf32>
    %15 = arith.mulf %14, %14 : vector<8x64xf32>
    %cst_9 = arith.constant dense<0.000000e+00> : vector<8xf32>
    %16 = vector.multi_reduction <add>, %15, %cst_9 [1] : vector<8x64xf32> to vector<8xf32>
    %17 = vector.shape_cast %16 : vector<8xf32> to vector<8x1xf32>
    %cst_10 = arith.constant 6.400000e+01 : f32
    %18 = vector.broadcast %cst_10 : f32 to vector<8x1xf32>
    %19 = arith.divf %17, %18 : vector<8x1xf32>
    %20 = vector.broadcast %12 : vector<8x1xf32> to vector<8x64xf32>
    %21 = arith.subf %8, %20 : vector<8x64xf32>
    %cst_11 = arith.constant 9.99999996E-13 : f32
    %22 = vector.broadcast %cst_11 : f32 to vector<8x1xf32>
    %23 = arith.addf %19, %22 : vector<8x1xf32>
    %24 = math.rsqrt %23 : vector<8x1xf32>
    %25 = vector.broadcast %24 : vector<8x1xf32> to vector<8x64xf32>
    %26 = arith.mulf %21, %25 : vector<8x64xf32>
    %c0_12 = arith.constant 0 : index
    %c0_13 = arith.constant 0 : index
    %27 = vector.load %arg5[%c0_12, %c0_13] : memref<1x64xf32, #tpu.memory_space<vmem>>, vector<1x64xf32>
    %28 = vector.broadcast %27 : vector<1x64xf32> to vector<8x64xf32>
    %29 = arith.mulf %26, %28 : vector<8x64xf32>
    %c0_14 = arith.constant 0 : index
    %c0_15 = arith.constant 0 : index
    %30 = vector.load %arg6[%c0_14, %c0_15] : memref<1x64xf32, #tpu.memory_space<vmem>>, vector<1x64xf32>
    %31 = vector.broadcast %30 : vector<1x64xf32> to vector<8x64xf32>
    %32 = arith.addf %29, %31 : vector<8x64xf32>
    %c0_16 = arith.constant 0 : index
    %c0_17 = arith.constant 0 : index
    %33 = vector.load %arg7[%c0_16, %c0_17] : memref<8x64xf32, #tpu.memory_space<vmem>>, vector<8x64xf32>
    tpu.vector_store %arg7[%c0_16, %c0_17], %32 {strides = array<i32>} : memref<8x64xf32, #tpu.memory_space<vmem>>, vector<8x64xf32>,
    return
  }
  func.func @transform_0(%arg0: i32) -> (i32, i32) {
    %c0_i32 = arith.constant 0 : i32
    %c0_i32_0 = arith.constant 0 : i32
    return %arg0, %c0_i32 : i32, i32
  }
  func.func @transform_1(%arg0: i32) -> (i32, i32) {
    %c0_i32 = arith.constant 0 : i32
    %c0_i32_0 = arith.constant 0 : i32
    return %arg0, %c0_i32 : i32, i32
  }
  func.func @transform_2(%arg0: i32) -> (i32, i32) {
    %c0_i32 = arith.constant 0 : i32
    %c0_i32_0 = arith.constant 0 : i32
    %c0_i32_1 = arith.constant 0 : i32
    return %c0_i32, %c0_i32_0 : i32, i32
  }
  func.func @transform_3(%arg0: i32) -> (i32, i32) {
    %c0_i32 = arith.constant 0 : i32
    %c0_i32_0 = arith.constant 0 : i32
    %c0_i32_1 = arith.constant 0 : i32
    return %c0_i32, %c0_i32_0 : i32, i32
  }
  func.func @transform_4(%arg0: i32) -> (i32, i32) {
    %c0_i32 = arith.constant 0 : i32
    %c0_i32_0 = arith.constant 0 : i32
    %c0_i32_1 = arith.constant 0 : i32
    return %c0_i32, %c0_i32_0 : i32, i32
  }
  func.func @transform_5(%arg0: i32) -> (i32, i32) {
    %c0_i32 = arith.constant 0 : i32
    %c0_i32_0 = arith.constant 0 : i32
    %c0_i32_1 = arith.constant 0 : i32
    return %c0_i32, %c0_i32_0 : i32, i32
  }
  func.func @transform_6(%arg0: i32) -> (i32, i32) {
    %c0_i32 = arith.constant 0 : i32
    %c0_i32_0 = arith.constant 0 : i32
    return %arg0, %c0_i32 : i32, i32
  }
}

module attributes {stable_mosaic.version = 11 : i64} {
  func.func @ffn_add_ln_kernel(%arg0: i32, %arg1: memref<8x64xf32, #tpu.memory_space<vmem>>, %arg2: memref<64x128xbf16, #tpu.memory_space<vmem>>, %arg3: memref<1x128xf32, #tpu.memory_space<vmem>>, %arg4: memref<128x64xbf16, #tpu.memory_space<vmem>>, %arg5: memref<1x64xf32, #tpu.memory_space<vmem>>, %arg6: memref<1x64xf32, #tpu.memory_space<vmem>>, %arg7: memref<1x64xf32, #tpu.memory_space<vmem>>, %arg8: memref<8x64xf32, #tpu.memory_space<vmem>>) attributes {dimension_semantics = [#tpu.dimension_semantics<parallel>], iteration_bounds = array<i64: 2>, scalar_prefetch = 0 : i64, scratch_operands = 0 : i64, tpu.core_type = #tpu.core_type<tc>, window_params = [{transform_indices = @transform_0, window_bounds = array<i64: 8, 64>}, {pipeline_mode = #tpu.pipeline_mode<synchronous>, transform_indices = @transform_1, window_bounds = array<i64: 64, 128>}, {pipeline_mode = #tpu.pipeline_mode<synchronous>, transform_indices = @transform_2, window_bounds = array<i64: 1, 128>}, {pipeline_mode = #tpu.pipeline_mode<synchronous>, transform_indices = @transform_3, window_bounds = array<i64: 128, 64>}, {pipeline_mode = #tpu.pipeline_mode<synchronous>, transform_indices = @transform_4, window_bounds = array<i64: 1, 64>}, {pipeline_mode = #tpu.pipeline_mode<synchronous>, transform_indices = @transform_5, window_bounds = array<i64: 1, 64>}, {pipeline_mode = #tpu.pipeline_mode<synchronous>, transform_indices = @transform_6, window_bounds = array<i64: 1, 64>}, {transform_indices = @transform_7, window_bounds = array<i64: 8, 64>}]} {
    %c0 = arith.constant 0 : index
    %c0_0 = arith.constant 0 : index
    %0 = vector.load %arg1[%c0, %c0_0] : memref<8x64xf32, #tpu.memory_space<vmem>>, vector<8x64xf32>
    %1 = arith.truncf %0 : vector<8x64xf32> to vector<8x64xbf16>
    %c0_1 = arith.constant 0 : index
    %c0_2 = arith.constant 0 : index
    %2 = vector.load %arg2[%c0_1, %c0_2] : memref<64x128xbf16, #tpu.memory_space<vmem>>, vector<64x128xbf16>
    %cst = arith.constant dense<0.000000e+00> : vector<8x128xf32>
    %3 = tpu.matmul %1, %2, %cst {dimension_numbers = #tpu.dot_dimension_numbers<[1], [0], [0], [1], [0, 0, 1, 1], [], []>} : vector<8x64xbf16>, vector<64x128xbf16>, vector<8x128xf32> -> vector<8x128xf32>
    %c0_3 = arith.constant 0 : index
    %c0_4 = arith.constant 0 : index
    %4 = vector.load %arg3[%c0_3, %c0_4] : memref<1x128xf32, #tpu.memory_space<vmem>>, vector<1x128xf32>
    %5 = vector.broadcast %4 : vector<1x128xf32> to vector<8x128xf32>
    %6 = arith.addf %3, %5 : vector<8x128xf32>
    %cst_5 = arith.constant 5.000000e-01 : f32
    %7 = vector.broadcast %cst_5 : f32 to vector<8x128xf32>
    %8 = arith.mulf %7, %6 : vector<8x128xf32>
    %cst_6 = arith.constant 4.471500e-02 : f32
    %9 = vector.broadcast %cst_6 : f32 to vector<8x128xf32>
    %10 = arith.mulf %9, %6 : vector<8x128xf32>
    %11 = arith.mulf %10, %6 : vector<8x128xf32>
    %12 = arith.mulf %11, %6 : vector<8x128xf32>
    %13 = arith.addf %6, %12 : vector<8x128xf32>
    %cst_7 = arith.constant 0.797884583 : f32
    %14 = vector.broadcast %cst_7 : f32 to vector<8x128xf32>
    %15 = arith.mulf %14, %13 : vector<8x128xf32>
    %16 = math.tanh %15 : vector<8x128xf32>
    %cst_8 = arith.constant 1.000000e+00 : f32
    %17 = vector.broadcast %cst_8 : f32 to vector<8x128xf32>
    %18 = arith.addf %17, %16 : vector<8x128xf32>
    %19 = arith.mulf %8, %18 : vector<8x128xf32>
    %20 = arith.truncf %19 : vector<8x128xf32> to vector<8x128xbf16>
    %c0_9 = arith.constant 0 : index
    %c0_10 = arith.constant 0 : index
    %21 = vector.load %arg4[%c0_9, %c0_10] : memref<128x64xbf16, #tpu.memory_space<vmem>>, vector<128x64xbf16>
    %cst_11 = arith.constant dense<0.000000e+00> : vector<8x64xf32>
    %22 = tpu.matmul %20, %21, %cst_11 {dimension_numbers = #tpu.dot_dimension_numbers<[1], [0], [0], [1], [0, 0, 1, 1], [], []>} : vector<8x128xbf16>, vector<128x64xbf16>, vector<8x64xf32> -> vector<8x64xf32>
    %c0_12 = arith.constant 0 : index
    %c0_13 = arith.constant 0 : index
    %23 = vector.load %arg5[%c0_12, %c0_13] : memref<1x64xf32, #tpu.memory_space<vmem>>, vector<1x64xf32>
    %24 = vector.broadcast %23 : vector<1x64xf32> to vector<8x64xf32>
    %25 = arith.addf %22, %24 : vector<8x64xf32>
    %26 = arith.addf %25, %0 : vector<8x64xf32>
    %cst_14 = arith.constant dense<0.000000e+00> : vector<8xf32>
    %27 = vector.multi_reduction <add>, %26, %cst_14 [1] : vector<8x64xf32> to vector<8xf32>
    %28 = vector.shape_cast %27 : vector<8xf32> to vector<8x1xf32>
    %cst_15 = arith.constant 6.400000e+01 : f32
    %29 = vector.broadcast %cst_15 : f32 to vector<8x1xf32>
    %30 = arith.divf %28, %29 : vector<8x1xf32>
    %31 = vector.broadcast %30 : vector<8x1xf32> to vector<8x64xf32>
    %32 = arith.subf %26, %31 : vector<8x64xf32>
    %33 = arith.mulf %32, %32 : vector<8x64xf32>
    %cst_16 = arith.constant dense<0.000000e+00> : vector<8xf32>
    %34 = vector.multi_reduction <add>, %33, %cst_16 [1] : vector<8x64xf32> to vector<8xf32>
    %35 = vector.shape_cast %34 : vector<8xf32> to vector<8x1xf32>
    %cst_17 = arith.constant 6.400000e+01 : f32
    %36 = vector.broadcast %cst_17 : f32 to vector<8x1xf32>
    %37 = arith.divf %35, %36 : vector<8x1xf32>
    %38 = vector.broadcast %30 : vector<8x1xf32> to vector<8x64xf32>
    %39 = arith.subf %26, %38 : vector<8x64xf32>
    %cst_18 = arith.constant 9.99999996E-13 : f32
    %40 = vector.broadcast %cst_18 : f32 to vector<8x1xf32>
    %41 = arith.addf %37, %40 : vector<8x1xf32>
    %42 = math.rsqrt %41 : vector<8x1xf32>
    %43 = vector.broadcast %42 : vector<8x1xf32> to vector<8x64xf32>
    %44 = arith.mulf %39, %43 : vector<8x64xf32>
    %c0_19 = arith.constant 0 : index
    %c0_20 = arith.constant 0 : index
    %45 = vector.load %arg6[%c0_19, %c0_20] : memref<1x64xf32, #tpu.memory_space<vmem>>, vector<1x64xf32>
    %46 = vector.broadcast %45 : vector<1x64xf32> to vector<8x64xf32>
    %47 = arith.mulf %44, %46 : vector<8x64xf32>
    %c0_21 = arith.constant 0 : index
    %c0_22 = arith.constant 0 : index
    %48 = vector.load %arg7[%c0_21, %c0_22] : memref<1x64xf32, #tpu.memory_space<vmem>>, vector<1x64xf32>
    %49 = vector.broadcast %48 : vector<1x64xf32> to vector<8x64xf32>
    %50 = arith.addf %47, %49 : vector<8x64xf32>
    %c0_23 = arith.constant 0 : index
    %c0_24 = arith.constant 0 : index
    %51 = vector.load %arg8[%c0_23, %c0_24] : memref<8x64xf32, #tpu.memory_space<vmem>>, vector<8x64xf32>
    tpu.vector_store %arg8[%c0_23, %c0_24], %50 {strides = array<i32>} : memref<8x64xf32, #tpu.memory_space<vmem>>, vector<8x64xf32>,
    return
  }
  func.func @transform_0(%arg0: i32) -> (i32, i32) {
    %c0_i32 = arith.constant 0 : i32
    %c0_i32_0 = arith.constant 0 : i32
    return %arg0, %c0_i32 : i32, i32
  }
  func.func @transform_1(%arg0: i32) -> (i32, i32) {
    %c0_i32 = arith.constant 0 : i32
    %c0_i32_0 = arith.constant 0 : i32
    %c0_i32_1 = arith.constant 0 : i32
    return %c0_i32, %c0_i32_0 : i32, i32
  }
  func.func @transform_2(%arg0: i32) -> (i32, i32) {
    %c0_i32 = arith.constant 0 : i32
    %c0_i32_0 = arith.constant 0 : i32
    %c0_i32_1 = arith.constant 0 : i32
    return %c0_i32, %c0_i32_0 : i32, i32
  }
  func.func @transform_3(%arg0: i32) -> (i32, i32) {
    %c0_i32 = arith.constant 0 : i32
    %c0_i32_0 = arith.constant 0 : i32
    %c0_i32_1 = arith.constant 0 : i32
    return %c0_i32, %c0_i32_0 : i32, i32
  }
  func.func @transform_4(%arg0: i32) -> (i32, i32) {
    %c0_i32 = arith.constant 0 : i32
    %c0_i32_0 = arith.constant 0 : i32
    %c0_i32_1 = arith.constant 0 : i32
    return %c0_i32, %c0_i32_0 : i32, i32
  }
  func.func @transform_5(%arg0: i32) -> (i32, i32) {
    %c0_i32 = arith.constant 0 : i32
    %c0_i32_0 = arith.constant 0 : i32
    %c0_i32_1 = arith.constant 0 : i32
    return %c0_i32, %c0_i32_0 : i32, i32
  }
  func.func @transform_6(%arg0: i32) -> (i32, i32) {
    %c0_i32 = arith.constant 0 : i32
    %c0_i32_0 = arith.constant 0 : i32
    %c0_i32_1 = arith.constant 0 : i32
    return %c0_i32, %c0_i32_0 : i32, i32
  }
  func.func @transform_7(%arg0: i32) -> (i32, i32) {
    %c0_i32 = arith.constant 0 : i32
    %c0_i32_0 = arith.constant 0 : i32
    return %arg0, %c0_i32 : i32, i32
  }
}

module attributes {stable_mosaic.version = 11 : i64} {
  func.func @classifier_kernel(%arg0: memref<2x64xf32, #tpu.memory_space<vmem>>, %arg1: memref<64x256xbf16, #tpu.memory_space<vmem>>, %arg2: memref<1x256xf32, #tpu.memory_space<vmem>>, %arg3: memref<256x10xbf16, #tpu.memory_space<vmem>>, %arg4: memref<1x10xf32, #tpu.memory_space<vmem>>, %arg5: memref<2x10xf32, #tpu.memory_space<vmem>>) attributes {dimension_semantics = [], scalar_prefetch = 0 : i64, scratch_operands = 0 : i64, tpu.core_type = #tpu.core_type<tc>} {
    %c0 = arith.constant 0 : index
    %c0_0 = arith.constant 0 : index
    %0 = vector.load %arg0[%c0, %c0_0] : memref<2x64xf32, #tpu.memory_space<vmem>>, vector<2x64xf32>
    %1 = arith.truncf %0 : vector<2x64xf32> to vector<2x64xbf16>
    %c0_1 = arith.constant 0 : index
    %c0_2 = arith.constant 0 : index
    %2 = vector.load %arg1[%c0_1, %c0_2] : memref<64x256xbf16, #tpu.memory_space<vmem>>, vector<64x256xbf16>
    %cst = arith.constant dense<0.000000e+00> : vector<2x256xf32>
    %3 = tpu.matmul %1, %2, %cst {dimension_numbers = #tpu.dot_dimension_numbers<[1], [0], [0], [1], [0, 0, 1, 1], [], []>} : vector<2x64xbf16>, vector<64x256xbf16>, vector<2x256xf32> -> vector<2x256xf32>
    %c0_3 = arith.constant 0 : index
    %c0_4 = arith.constant 0 : index
    %4 = vector.load %arg2[%c0_3, %c0_4] : memref<1x256xf32, #tpu.memory_space<vmem>>, vector<1x256xf32>
    %5 = vector.broadcast %4 : vector<1x256xf32> to vector<2x256xf32>
    %6 = arith.addf %3, %5 : vector<2x256xf32>
    %cst_5 = arith.constant 0.000000e+00 : f32
    %7 = vector.broadcast %cst_5 : f32 to vector<2x256xf32>
    %8 = arith.maximumf %6, %7 : vector<2x256xf32>
    %9 = arith.truncf %8 : vector<2x256xf32> to vector<2x256xbf16>
    %c0_6 = arith.constant 0 : index
    %c0_7 = arith.constant 0 : index
    %10 = vector.load %arg3[%c0_6, %c0_7] : memref<256x10xbf16, #tpu.memory_space<vmem>>, vector<256x10xbf16>
    %cst_8 = arith.constant dense<0.000000e+00> : vector<2x10xf32>
    %11 = tpu.matmul %9, %10, %cst_8 {dimension_numbers = #tpu.dot_dimension_numbers<[1], [0], [0], [1], [0, 0, 1, 1], [], []>} : vector<2x256xbf16>, vector<256x10xbf16>, vector<2x10xf32> -> vector<2x10xf32>
    %c0_9 = arith.constant 0 : index
    %c0_10 = arith.constant 0 : index
    %12 = vector.load %arg4[%c0_9, %c0_10] : memref<1x10xf32, #tpu.memory_space<vmem>>, vector<1x10xf32>
    %13 = vector.broadcast %12 : vector<1x10xf32> to vector<2x10xf32>
    %14 = arith.addf %11, %13 : vector<2x10xf32>
    %c0_11 = arith.constant 0 : index
    %c0_12 = arith.constant 0 : index
    %15 = vector.load %arg5[%c0_11, %c0_12] : memref<2x10xf32, #tpu.memory_space<vmem>>, vector<2x10xf32>
    tpu.vector_store %arg5[%c0_11, %c0_12], %14 {strides = array<i32>} : memref<2x10xf32, #tpu.memory_space<vmem>>, vector<2x10xf32>,
    return
  }
}

</mosaic_0001>

<llo_original>
// kernel: bert_mlp_forward.10
$region0: #{bert_mlp_forward.10}
  #allocation0 [shape = 'u32[]', space=smem, size = 0x4, offset = 0x4, fixed_abs, tag = 'smem constant byte address 0x4 - core index']
  #allocation1 [shape = 'u32[144,128]{1,0:T(1,128)}', space=vmem, size = 0x12000, scoped, tag = 'internal scratch']
  %s0 = inlined_call_operand.vmem [shape: f32[16,64], index: 0, kind: input, shape index: {}]
  %s1 = inlined_call_operand.vmem [shape: f32[1,64], index: 1, kind: input, shape index: {}]
  %s2 = inlined_call_operand.vmem [shape: f32[1,64], index: 2, kind: input, shape index: {}]
  %s3 = inlined_call_operand.vmem [shape: f32[16,64], index: 3, kind: output, shape index: {}]
  %s4 = sld [smem:[#allocation0]]
  $region45: #{bert_mlp_forward.10} parent=0
    _
  %s6 = ssub.s32 1, %s4
  %s7 = scalar_select 0, %s6, %s4
  loop: start=0, step=1, limit=4
  $region2: #{bert_mlp_forward.10} parent=0 // loop_pre_header
    _
  $region3: #{bert_mlp_forward.10} parent=0 // loop_header
    %s9 = sphi 0, %s13
    %p10 = scmp.ge.s32.totalorder %s9, 4
    %s19 = sphi 0, %s21
    %s22 = sphi 0, %s19
    %s23 = sphi 0, %s22
    %s39 = sphi 0, %s23
    %s43 = sphi 0, %s43
    %s45 = sphi 0, %s43
    %s46 = sphi 0, %s45
    %s60 = sphi 0, %s46
    %s64 = sphi 0, %s64
    %s66 = sphi 0, %s64
    %s67 = sphi 0, %s66
    %s81 = sphi 0, %s67
    %s87 = sphi 0, %s89
    %s90 = sphi 0, %s87
    %s91 = sphi 0, %s90
    %s107 = sphi 0, %s91
  $region4: #{bert_mlp_forward.10} parent=0 // loop_header_branch
    %12 = sbr.rel (%p10) target = $region8
  $region5: #{bert_mlp_forward.10} parent=0 // loop_body
    %s14 = ssub.s32 %s9, 1
    %s15 = ssub.s32 %s9, 2
    %s16 = sadd.s32 %s9, 1
    %s17 = ssub.s32 %s9, %s16
    %p18 = scmp.eq.s32.totalorder %s17, 0
    %s20 = sadd.s32 %s19, 1
    %s21 = scalar_select %p18, %s19, %s20
    %p24 = pneg %p18
    %p25 = scmp.eq.s32.totalorder %s9, 1
    %p26 = por %p24, %p25
    %p27 = scmp.ne.s32.totalorder %s19, %s22
    %p28 = scmp.eq.s32.totalorder %s9, 0
    %p29 = por %p27, %p28
    %p30 = scmp.ne.s32.totalorder %s19, %s22
    %p31 = scmp.eq.s32.totalorder %s14, 1
    %p32 = por %p30, %p31
    %p33 = scmp.ne.s32.totalorder %s22, %s23
    %p34 = scmp.eq.s32.totalorder %s14, 0
    %p35 = por %p33, %p34
    %p36 = scmp.ne.s32.totalorder %s22, %s23
    %p37 = scmp.eq.s32.totalorder %s15, 1
    %p38 = por %p36, %p37
    %p40 = scmp.ne.s32.totalorder %s23, %s39
    %p41 = scmp.eq.s32.totalorder %s15, 0
    %p42 = por %p40, %p41
    %s44 = sadd.s32 %s43, 1
    %p47 = scmp.eq.s32.totalorder %s9, 1
    %p48 = scmp.ne.s32.totalorder %s43, %s45
    %p49 = scmp.eq.s32.totalorder %s9, 0
    %p50 = por %p48, %p49
    %p51 = scmp.ne.s32.totalorder %s43, %s45
    %p52 = scmp.eq.s32.totalorder %s14, 1
    %p53 = por %p51, %p52
    %p54 = scmp.ne.s32.totalorder %s45, %s46
    %p55 = scmp.eq.s32.totalorder %s14, 0
    %p56 = por %p54, %p55
    %p57 = scmp.ne.s32.totalorder %s45, %s46
    %p58 = scmp.eq.s32.totalorder %s15, 1
    %p59 = por %p57, %p58
    %p61 = scmp.ne.s32.totalorder %s46, %s60
    %p62 = scmp.eq.s32.totalorder %s15, 0
    %p63 = por %p61, %p62
    %s65 = sadd.s32 %s64, 1
    %p68 = scmp.eq.s32.totalorder %s9, 1
    %p69 = scmp.ne.s32.totalorder %s64, %s66
    %p70 = scmp.eq.s32.totalorder %s9, 0
    %p71 = por %p69, %p70
    %p72 = scmp.ne.s32.totalorder %s64, %s66
    %p73 = scmp.eq.s32.totalorder %s14, 1
    %p74 = por %p72, %p73
    %p75 = scmp.ne.s32.totalorder %s66, %s67
    %p76 = scmp.eq.s32.totalorder %s14, 0
    %p77 = por %p75, %p76
    %p78 = scmp.ne.s32.totalorder %s66, %s67
    %p79 = scmp.eq.s32.totalorder %s15, 1
    %p80 = por %p78, %p79
    %p82 = scmp.ne.s32.totalorder %s67, %s81
    %p83 = scmp.eq.s32.totalorder %s15, 0
    %p84 = por %p82, %p83
    %s85 = ssub.s32 %s9, %s16
    %p86 = scmp.eq.s32.totalorder %s85, 0
    %s88 = sadd.s32 %s87, 1
    %s89 = scalar_select %p86, %s87, %s88
    %p92 = pneg %p86
    %p93 = scmp.eq.s32.totalorder %s9, 1
    %p94 = por %p92, %p93
    %p95 = scmp.ne.s32.totalorder %s87, %s90
    %p96 = scmp.eq.s32.totalorder %s9, 0
    %p97 = por %p95, %p96
    %p98 = scmp.ne.s32.totalorder %s87, %s90
    %p99 = scmp.eq.s32.totalorder %s14, 1
    %p100 = por %p98, %p99
    %p101 = scmp.ne.s32.totalorder %s90, %s91
    %p102 = scmp.eq.s32.totalorder %s14, 0
    %p103 = por %p101, %p102
    %p104 = scmp.ne.s32.totalorder %s90, %s91
    %p105 = scmp.eq.s32.totalorder %s15, 1
    %p106 = por %p104, %p105
    %p108 = scmp.ne.s32.totalorder %s91, %s107
    %p109 = scmp.eq.s32.totalorder %s15, 0
    %p110 = por %p108, %p109
    %p111 = scmp.le.s32.totalorder 1, %s9
    %p112 = scmp.lt.s32.totalorder %s9, 3
    %p113 = pnand %p111, %p112
    %p114 = pneg %p113
    // Predicated region
    $region9: #{bert_mlp_forward.10} parent=5 // pred_check
      _
    $region10: #{bert_mlp_forward.10} parent=5 // pred_check_branch
      %116 = sbr.rel (%p113) target = $region12
    $region11: #{bert_mlp_forward.10} parent=5 // pred_region
      %s117 = ssub.s32 %s9, 1
      // Predicated region
      $region13: #{bert_mlp_forward.10} parent=11 // pred_check
        %p118 = pneg %p56
      $region14: #{bert_mlp_forward.10} parent=11 // pred_check_branch
        %120 = sbr.rel (%p118) target = $region16
      $region15: #{bert_mlp_forward.10} parent=11 // pred_region
        _
      $region16: #{bert_mlp_forward.10} parent=11 // pred_fallthru
        _
      // Predicated region
      $region17: #{bert_mlp_forward.10} parent=11 // pred_check
        %p121 = pneg %p77
      $region18: #{bert_mlp_forward.10} parent=11 // pred_check_branch
        %123 = sbr.rel (%p121) target = $region20
      $region19: #{bert_mlp_forward.10} parent=11 // pred_region
        _
      $region20: #{bert_mlp_forward.10} parent=11 // pred_fallthru
        _
    $region12: #{bert_mlp_forward.10} parent=5 // pred_fallthru
      _
    %p124 = scmp.lt.s32.totalorder %s9, 2
    // Predicated region
    $region21: #{bert_mlp_forward.10} parent=5 // pred_check
      %p125 = pneg %p124
    $region22: #{bert_mlp_forward.10} parent=5 // pred_check_branch
      %127 = sbr.rel (%p125) target = $region24
    $region23: #{bert_mlp_forward.10} parent=5 // pred_region
      // Predicated region
      $region25: #{bert_mlp_forward.10} parent=23 // pred_check
        %p128 = pneg %p29
      $region26: #{bert_mlp_forward.10} parent=23 // pred_check_branch
        %130 = sbr.rel (%p128) target = $region28
      $region27: #{bert_mlp_forward.10} parent=23 // pred_region
        %p131 = scmp.lt.s32.totalorder %s9, 1
        %s132 = scalar_select %p131, %s9, 1
        %s133 = smul.addr %s132, 8
        %s134 = scalar_lea.vmem %s0, %s133
      $region28: #{bert_mlp_forward.10} parent=23 // pred_fallthru
        _
    $region24: #{bert_mlp_forward.10} parent=5 // pred_fallthru
      _
    %p135 = scmp.le.s32.totalorder 1, %s9
    %p136 = scmp.lt.s32.totalorder %s9, 3
    %p137 = pnand %p135, %p136
    %p138 = pneg %p137
    // Predicated region
    $region29: #{bert_mlp_forward.10} parent=5 // pred_check
      _
    $region30: #{bert_mlp_forward.10} parent=5 // pred_check_branch
      %140 = sbr.rel (%p137) target = $region32
    $region31: #{bert_mlp_forward.10} parent=5 // pred_region
      %s141 = ssub.s32 %s9, 1
      %p142 = scmp.lt.s32.totalorder %s14, 1
      %s143 = scalar_select %p142, %s14, 1
      %s144 = smul.addr %s143, 8
      %s145 = scalar_lea.vmem %s0, %s144
      %p146 = pneg %p35
      %p147 = pneg %p32
      %p148 = pneg %p56
      %p149 = pneg %p53
      %p150 = pneg %p77
      %p151 = pneg %p74
      %p152 = pneg %p103
      %p153 = pneg %p100
      %p154 = scmp.lt.s32.totalorder %s14, 1
      %s155 = scalar_select %p154, %s14, 1
      %s156 = smul.addr %s155, 8
      %s157 = scalar_lea.vmem %s3, %s156
      %p158 = scmp.lt.s32.totalorder %s14, 1
      %s159 = scalar_select %p158, %s14, 1
      %s160 = smul.addr %s159, 8
      %s161 = scalar_lea.vmem %s0, %s160
      %p162 = scmp.lt.s32.totalorder %s14, 1
      %s163 = scalar_select %p162, %s14, 1
      %s164 = smul.addr %s163, 8
      %s165 = scalar_lea.vmem %s3, %s164
      %v166 = vld [vmem:[%s161] sm:$0xff]
      %vm167 = vcmask 523264
      %v168 = vsel %vm167, %v166, 0.0
      %169 = vadd.xlane.f32.xlu0 %v168
      %v170 = vpop.xlane.xlu0 %169
      %v171 = vrcp.pop 64.0
      %v172 = vmul.f32 %v170, %v171
      %v173 = vsub.f32 %v166, %v172
      %v174 = vmul.f32 %v173, %v173
      %v175 = vsel %vm167, %v174, 0.0
      %176 = vadd.xlane.f32.xlu0 %v175
      %v177 = vpop.xlane.xlu0 %176
      %v178 = vmul.f32 %v177, %v171
      %v179 = vadd.f32 %v178, 1e-12
      %v180 = vrsqrt.pop %v179
      %v181 = vmul.f32 %v173, %v180
      %v182 = vld [vmem:[%s1] sm:$0x1]
      %v184 = vlaneseq
      %v185 = vshrl.u32 %v184, 7
      %v186 = vsub.s32 0, %v185
      %v187 = vrot.slane %v182, %v186
      %v189 = vmul.f32 %v181, %v187
      %v190 = vld [vmem:[%s2] sm:$0x1]
      %v192 = vlaneseq
      %v193 = vshrl.u32 %v192, 7
      %v194 = vsub.s32 0, %v193
      %v195 = vrot.slane %v190, %v194
      %v197 = vadd.f32 %v189, %v195
      %198 = vst.msk [vmem:[%s165] sm:$0xff] %vm167, %v197
      %p199 = scmp.lt.s32.totalorder %s14, 1
      %s200 = scalar_select %p199, %s14, 1
      %s201 = smul.addr %s200, 8
      %s202 = scalar_lea.vmem %s3, %s201
      // Predicated region
      $region33: #{bert_mlp_forward.10} parent=31 // pred_check
        %p203 = pneg %p100
      $region34: #{bert_mlp_forward.10} parent=31 // pred_check_branch
        %205 = sbr.rel (%p203) target = $region36
      $region35: #{bert_mlp_forward.10} parent=31 // pred_region
        _
      $region36: #{bert_mlp_forward.10} parent=31 // pred_fallthru
        _
    $region32: #{bert_mlp_forward.10} parent=5 // pred_fallthru
      _
    %p206 = scmp.le.s32.totalorder 2, %s9
    // Predicated region
    $region37: #{bert_mlp_forward.10} parent=5 // pred_check
      %p207 = pneg %p206
    $region38: #{bert_mlp_forward.10} parent=5 // pred_check_branch
      %209 = sbr.rel (%p207) target = $region40
    $region39: #{bert_mlp_forward.10} parent=5 // pred_region
      %s210 = ssub.s32 %s9, 2
      // Predicated region
      $region41: #{bert_mlp_forward.10} parent=39 // pred_check
        %p211 = pneg %p106
      $region42: #{bert_mlp_forward.10} parent=39 // pred_check_branch
        %213 = sbr.rel (%p211) target = $region44
      $region43: #{bert_mlp_forward.10} parent=39 // pred_region
        %p214 = scmp.lt.s32.totalorder %s15, 1
        %s215 = scalar_select %p214, %s15, 1
        %s216 = smul.addr %s215, 8
        %s217 = scalar_lea.vmem %s3, %s216
      $region44: #{bert_mlp_forward.10} parent=39 // pred_fallthru
        _
    $region40: #{bert_mlp_forward.10} parent=5 // pred_fallthru
      _
  $region6: #{bert_mlp_forward.10} parent=0 // loop_footer
    %s13 = sadd.s32 1, %s9
  $region7: #{bert_mlp_forward.10} parent=0 // loop_footer_branch
    %8 = sbr.rel target = $region3
  $region8: #{bert_mlp_forward.10} parent=0 // loop_exit
    _

// kernel: bert_mlp_forward.11
$region0: #{bert_mlp_forward.11}
  #allocation0 [shape = 'u32[]', space=smem, size = 0x4, offset = 0x4, fixed_abs, tag = 'smem constant byte address 0x4 - core index']
  #allocation1 [shape = 'u32[144,128]{1,0:T(1,128)}', space=vmem, size = 0x12000, scoped, tag = 'internal scratch']
  %s0 = inlined_call_operand.vmem [shape: f32[16,64], index: 0, kind: input, shape index: {}]
  %s1 = inlined_call_operand.vmem [shape: bf16[64,192], index: 1, kind: input, shape index: {}]
  %s2 = inlined_call_operand.vmem [shape: f32[1,192], index: 2, kind: input, shape index: {}]
  %s3 = inlined_call_operand.vmem [shape: f32[16,192], index: 3, kind: output, shape index: {}]
  %s4 = sld [smem:[#allocation0]]
  $region45: #{bert_mlp_forward.11} parent=0
    _
  %s6 = ssub.s32 1, %s4
  %s7 = scalar_select 0, %s6, %s4
  loop: start=0, step=1, limit=4
  $region2: #{bert_mlp_forward.11} parent=0 // loop_pre_header
    _
  $region3: #{bert_mlp_forward.11} parent=0 // loop_header
    %s9 = sphi 0, %s13
    %p10 = scmp.ge.s32.totalorder %s9, 4
    %s19 = sphi 0, %s21
    %s22 = sphi 0, %s19
    %s23 = sphi 0, %s22
    %s39 = sphi 0, %s23
    %s43 = sphi 0, %s43
    %s45 = sphi 0, %s43
    %s46 = sphi 0, %s45
    %s60 = sphi 0, %s46
    %s64 = sphi 0, %s64
    %s66 = sphi 0, %s64
    %s67 = sphi 0, %s66
    %s81 = sphi 0, %s67
    %s87 = sphi 0, %s89
    %s90 = sphi 0, %s87
    %s91 = sphi 0, %s90
    %s107 = sphi 0, %s91
  $region4: #{bert_mlp_forward.11} parent=0 // loop_header_branch
    %12 = sbr.rel (%p10) target = $region8
  $region5: #{bert_mlp_forward.11} parent=0 // loop_body
    %s14 = ssub.s32 %s9, 1
    %s15 = ssub.s32 %s9, 2
    %s16 = sadd.s32 %s9, 1
    %s17 = ssub.s32 %s9, %s16
    %p18 = scmp.eq.s32.totalorder %s17, 0
    %s20 = sadd.s32 %s19, 1
    %s21 = scalar_select %p18, %s19, %s20
    %p24 = pneg %p18
    %p25 = scmp.eq.s32.totalorder %s9, 1
    %p26 = por %p24, %p25
    %p27 = scmp.ne.s32.totalorder %s19, %s22
    %p28 = scmp.eq.s32.totalorder %s9, 0
    %p29 = por %p27, %p28
    %p30 = scmp.ne.s32.totalorder %s19, %s22
    %p31 = scmp.eq.s32.totalorder %s14, 1
    %p32 = por %p30, %p31
    %p33 = scmp.ne.s32.totalorder %s22, %s23
    %p34 = scmp.eq.s32.totalorder %s14, 0
    %p35 = por %p33, %p34
    %p36 = scmp.ne.s32.totalorder %s22, %s23
    %p37 = scmp.eq.s32.totalorder %s15, 1
    %p38 = por %p36, %p37
    %p40 = scmp.ne.s32.totalorder %s23, %s39
    %p41 = scmp.eq.s32.totalorder %s15, 0
    %p42 = por %p40, %p41
    %s44 = sadd.s32 %s43, 1
    %p47 = scmp.eq.s32.totalorder %s9, 1
    %p48 = scmp.ne.s32.totalorder %s43, %s45
    %p49 = scmp.eq.s32.totalorder %s9, 0
    %p50 = por %p48, %p49
    %p51 = scmp.ne.s32.totalorder %s43, %s45
    %p52 = scmp.eq.s32.totalorder %s14, 1
    %p53 = por %p51, %p52
    %p54 = scmp.ne.s32.totalorder %s45, %s46
    %p55 = scmp.eq.s32.totalorder %s14, 0
    %p56 = por %p54, %p55
    %p57 = scmp.ne.s32.totalorder %s45, %s46
    %p58 = scmp.eq.s32.totalorder %s15, 1
    %p59 = por %p57, %p58
    %p61 = scmp.ne.s32.totalorder %s46, %s60
    %p62 = scmp.eq.s32.totalorder %s15, 0
    %p63 = por %p61, %p62
    %s65 = sadd.s32 %s64, 1
    %p68 = scmp.eq.s32.totalorder %s9, 1
    %p69 = scmp.ne.s32.totalorder %s64, %s66
    %p70 = scmp.eq.s32.totalorder %s9, 0
    %p71 = por %p69, %p70
    %p72 = scmp.ne.s32.totalorder %s64, %s66
    %p73 = scmp.eq.s32.totalorder %s14, 1
    %p74 = por %p72, %p73
    %p75 = scmp.ne.s32.totalorder %s66, %s67
    %p76 = scmp.eq.s32.totalorder %s14, 0
    %p77 = por %p75, %p76
    %p78 = scmp.ne.s32.totalorder %s66, %s67
    %p79 = scmp.eq.s32.totalorder %s15, 1
    %p80 = por %p78, %p79
    %p82 = scmp.ne.s32.totalorder %s67, %s81
    %p83 = scmp.eq.s32.totalorder %s15, 0
    %p84 = por %p82, %p83
    %s85 = ssub.s32 %s9, %s16
    %p86 = scmp.eq.s32.totalorder %s85, 0
    %s88 = sadd.s32 %s87, 1
    %s89 = scalar_select %p86, %s87, %s88
    %p92 = pneg %p86
    %p93 = scmp.eq.s32.totalorder %s9, 1
    %p94 = por %p92, %p93
    %p95 = scmp.ne.s32.totalorder %s87, %s90
    %p96 = scmp.eq.s32.totalorder %s9, 0
    %p97 = por %p95, %p96
    %p98 = scmp.ne.s32.totalorder %s87, %s90
    %p99 = scmp.eq.s32.totalorder %s14, 1
    %p100 = por %p98, %p99
    %p101 = scmp.ne.s32.totalorder %s90, %s91
    %p102 = scmp.eq.s32.totalorder %s14, 0
    %p103 = por %p101, %p102
    %p104 = scmp.ne.s32.totalorder %s90, %s91
    %p105 = scmp.eq.s32.totalorder %s15, 1
    %p106 = por %p104, %p105
    %p108 = scmp.ne.s32.totalorder %s91, %s107
    %p109 = scmp.eq.s32.totalorder %s15, 0
    %p110 = por %p108, %p109
    %p111 = scmp.le.s32.totalorder 1, %s9
    %p112 = scmp.lt.s32.totalorder %s9, 3
    %p113 = pnand %p111, %p112
    %p114 = pneg %p113
    // Predicated region
    $region9: #{bert_mlp_forward.11} parent=5 // pred_check
      _
    $region10: #{bert_mlp_forward.11} parent=5 // pred_check_branch
      %116 = sbr.rel (%p113) target = $region12
    $region11: #{bert_mlp_forward.11} parent=5 // pred_region
      %s117 = ssub.s32 %s9, 1
      // Predicated region
      $region13: #{bert_mlp_forward.11} parent=11 // pred_check
        %p118 = pneg %p56
      $region14: #{bert_mlp_forward.11} parent=11 // pred_check_branch
        %120 = sbr.rel (%p118) target = $region16
      $region15: #{bert_mlp_forward.11} parent=11 // pred_region
        _
      $region16: #{bert_mlp_forward.11} parent=11 // pred_fallthru
        _
      // Predicated region
      $region17: #{bert_mlp_forward.11} parent=11 // pred_check
        %p121 = pneg %p77
      $region18: #{bert_mlp_forward.11} parent=11 // pred_check_branch
        %123 = sbr.rel (%p121) target = $region20
      $region19: #{bert_mlp_forward.11} parent=11 // pred_region
        _
      $region20: #{bert_mlp_forward.11} parent=11 // pred_fallthru
        _
    $region12: #{bert_mlp_forward.11} parent=5 // pred_fallthru
      _
    %p124 = scmp.lt.s32.totalorder %s9, 2
    // Predicated region
    $region21: #{bert_mlp_forward.11} parent=5 // pred_check
      %p125 = pneg %p124
    $region22: #{bert_mlp_forward.11} parent=5 // pred_check_branch
      %127 = sbr.rel (%p125) target = $region24
    $region23: #{bert_mlp_forward.11} parent=5 // pred_region
      // Predicated region
      $region25: #{bert_mlp_forward.11} parent=23 // pred_check
        %p128 = pneg %p29
      $region26: #{bert_mlp_forward.11} parent=23 // pred_check_branch
        %130 = sbr.rel (%p128) target = $region28
      $region27: #{bert_mlp_forward.11} parent=23 // pred_region
        %p131 = scmp.lt.s32.totalorder %s9, 1
        %s132 = scalar_select %p131, %s9, 1
        %s133 = smul.addr %s132, 8
        %s134 = scalar_lea.vmem %s0, %s133
      $region28: #{bert_mlp_forward.11} parent=23 // pred_fallthru
        _
    $region24: #{bert_mlp_forward.11} parent=5 // pred_fallthru
      _
    %p135 = scmp.le.s32.totalorder 1, %s9
    %p136 = scmp.lt.s32.totalorder %s9, 3
    %p137 = pnand %p135, %p136
    %p138 = pneg %p137
    // Predicated region
    $region29: #{bert_mlp_forward.11} parent=5 // pred_check
      _
    $region30: #{bert_mlp_forward.11} parent=5 // pred_check_branch
      %140 = sbr.rel (%p137) target = $region32
    $region31: #{bert_mlp_forward.11} parent=5 // pred_region
      %s141 = ssub.s32 %s9, 1
      %p142 = scmp.lt.s32.totalorder %s14, 1
      %s143 = scalar_select %p142, %s14, 1
      %s144 = smul.addr %s143, 8
      %s145 = scalar_lea.vmem %s0, %s144
      %p146 = pneg %p35
      %p147 = pneg %p32
      %p148 = pneg %p56
      %p149 = pneg %p53
      %p150 = pneg %p77
      %p151 = pneg %p74
      %p152 = pneg %p103
      %p153 = pneg %p100
      %p154 = scmp.lt.s32.totalorder %s14, 1
      %s155 = scalar_select %p154, %s14, 1
      %s156 = smul.addr %s155, 2
      %s157 = smul.addr %s156, 8
      %s158 = scalar_lea.vmem %s3, %s157
      %p159 = scmp.lt.s32.totalorder %s14, 1
      %s160 = scalar_select %p159, %s14, 1
      %s161 = smul.addr %s160, 8
      %s162 = scalar_lea.vmem %s0, %s161
      %p163 = scmp.lt.s32.totalorder %s14, 1
      %s164 = scalar_select %p163, %s14, 1
      %s165 = smul.addr %s164, 2
      %s166 = smul.addr %s165, 8
      %s167 = scalar_lea.vmem %s3, %s166
      %v169 = vld [vmem:[%s162] sm:$0xff]
      %v170 = vpack.c.bf16 %v169, %v169
      %v171 = vld [vmem:[%s1] sm:$0xff]
      %v172 = vld [vmem:[%s1 + $0x8] sm:$0xff]
      %v173 = vld [vmem:[%s1 + $0x10] sm:$0xff]
      %v174 = vld [vmem:[%s1 + $0x18] sm:$0xff]
      %v175 = vld [vmem:[%s1 + $0x20] sm:$0xff]
      %v176 = vld [vmem:[%s1 + $0x28] sm:$0xff]
      %v177 = vld [vmem:[%s1 + $0x30] sm:$0xff]
      %v178 = vld [vmem:[%s1 + $0x38] sm:$0xff]
      %v179 = vld [vmem:[%s2] sm:$0x3]
      %v181 = vlaneseq
      %v182 = vshrl.u32 %v181, 7
      %v183 = vsub.s32 0, %v182
      %v184 = vrot.slane %v179, %v183
      %v185 = vlaneseq
      %v186 = vshrl.u32 %v185, 7
      %v187 = vsub.s32 1, %v186
      %v188 = vrot.slane %v179, %v187
      %v199 = vunpack.c.l.b16 %v171
      %v200 = vunpack.c.h.b16 %v171
      %v201 = vunpack.c.l.b16 %v172
      %v202 = vunpack.c.h.b16 %v172
      %v203 = vunpack.c.l.b16 %v173
      %v204 = vunpack.c.h.b16 %v173
      %v205 = vunpack.c.l.b16 %v174
      %v206 = vunpack.c.h.b16 %v174
      %v207 = vunpack.c.l.b16 %v175
      %v208 = vunpack.c.h.b16 %v175
      %v209 = vunpack.c.l.b16 %v176
      %v210 = vunpack.c.h.b16 %v176
      %v211 = vunpack.c.l.b16 %v177
      %v212 = vunpack.c.h.b16 %v177
      %v213 = vunpack.c.l.b16 %v178
      %v214 = vunpack.c.h.b16 %v178
      %v215 = vpack.c.b16 %v201, %v199
      %v216 = vpack.c.b16 %v202, %v200
      %v217 = vpack.c.b16 %v205, %v203
      %v218 = vpack.c.b16 %v206, %v204
      %v219 = vpack.c.b16 %v209, %v207
      %v220 = vpack.c.b16 %v210, %v208
      %v221 = vpack.c.b16 %v213, %v211
      %v222 = vpack.c.b16 %v214, %v212
      %vm231 = vcmask 523264
      %v233 = vsel %vm231, %v170, 0
      %235 = vmatprep.subr.bf16.mxu0 0
      %236 = vmatpush1.bf16.msra.mxu0 0
      %237 = vmatprep.subr.bf16.mxu0 0
      %238 = vmatpush1.bf16.msra.mxu0 0
      %239 = vmatprep.subr.bf16.mxu0 0
      %240 = vmatpush1.bf16.msra.mxu0 0
      %241 = vmatprep.subr.bf16.mxu0 0
      %242 = vmatpush1.bf16.msra.mxu0 0
      %243 = vmatprep.subr.bf16.mxu0 %v222
      %244 = vmatpush1.bf16.msra.mxu0 %v221
      %245 = vmatprep.subr.bf16.mxu0 %v220
      %246 = vmatpush1.bf16.msra.mxu0 %v219
      %247 = vmatprep.subr.bf16.mxu0 %v218
      %248 = vmatpush1.bf16.msra.mxu0 %v217
      %249 = vmatprep.subr.bf16.mxu0 %v216
      %250 = vmatpush1.bf16.msra.mxu0 %v215
      %251 = vmatprep.subr.bf16.mxu0 0
      %252 = vmatpush2.bf16.msra.mxu0 0
      %253 = vmatprep.subr.bf16.mxu0 0
      %254 = vmatpush2.bf16.msra.mxu0 0
      %255 = vmatprep.subr.bf16.mxu0 0
      %256 = vmatpush2.bf16.msra.mxu0 0
      %257 = vmatprep.subr.bf16.mxu0 0
      %258 = vmatpush2.bf16.msra.mxu0 0
      %259 = vmatprep.subr.bf16.mxu0 0
      %260 = vmatpush2.bf16.msra.mxu0 0
      %261 = vmatprep.subr.bf16.mxu0 0
      %262 = vmatpush2.bf16.msra.mxu0 0
      %263 = vmatprep.subr.bf16.mxu0 0
      %264 = vmatpush2.bf16.msra.mxu0 0
      %265 = vmatprep.subr.bf16.mxu0 0
      %266 = vmatpush2.bf16.msra.mxu0 0
      %267 = vmatprep.mubr.bf16.mxu0 0
      %268 = vmatmul.mubr.bf16.gmra.mxu0 %v233
      %v269 = vpop.f32.mrf.mxu0
      %v270 = vadd.f32 %v184, %v269
      %v271 = vpop.f32.mrf.mxu0
      %v272 = vadd.f32 %v188, %v271
      %v273 = vpop.f32.mrf.mxu0
      %v274 = vpop.f32.mrf.mxu0
      %275 = vdwg.mxu0
      %276 = vst [vmem:[%s167] sm:$0xff] %v270
      %277 = vst.msk [vmem:[%s167 + $0x8] sm:$0xff] %vm231, %v272
      %p278 = scmp.lt.s32.totalorder %s14, 1
      %s279 = scalar_select %p278, %s14, 1
      %s280 = smul.addr %s279, 2
      %s281 = smul.addr %s280, 8
      %s282 = scalar_lea.vmem %s3, %s281
      // Predicated region
      $region33: #{bert_mlp_forward.11} parent=31 // pred_check
        %p283 = pneg %p100
      $region34: #{bert_mlp_forward.11} parent=31 // pred_check_branch
        %285 = sbr.rel (%p283) target = $region36
      $region35: #{bert_mlp_forward.11} parent=31 // pred_region
        _
      $region36: #{bert_mlp_forward.11} parent=31 // pred_fallthru
        _
    $region32: #{bert_mlp_forward.11} parent=5 // pred_fallthru
      _
    %p286 = scmp.le.s32.totalorder 2, %s9
    // Predicated region
    $region37: #{bert_mlp_forward.11} parent=5 // pred_check
      %p287 = pneg %p286
    $region38: #{bert_mlp_forward.11} parent=5 // pred_check_branch
      %289 = sbr.rel (%p287) target = $region40
    $region39: #{bert_mlp_forward.11} parent=5 // pred_region
      %s290 = ssub.s32 %s9, 2
      // Predicated region
      $region41: #{bert_mlp_forward.11} parent=39 // pred_check
        %p291 = pneg %p106
      $region42: #{bert_mlp_forward.11} parent=39 // pred_check_branch
        %293 = sbr.rel (%p291) target = $region44
      $region43: #{bert_mlp_forward.11} parent=39 // pred_region
        %p294 = scmp.lt.s32.totalorder %s15, 1
        %s295 = scalar_select %p294, %s15, 1
        %s296 = smul.addr %s295, 2
        %s297 = smul.addr %s296, 8
        %s298 = scalar_lea.vmem %s3, %s297
      $region44: #{bert_mlp_forward.11} parent=39 // pred_fallthru
        _
    $region40: #{bert_mlp_forward.11} parent=5 // pred_fallthru
      _
  $region6: #{bert_mlp_forward.11} parent=0 // loop_footer
    %s13 = sadd.s32 1, %s9
  $region7: #{bert_mlp_forward.11} parent=0 // loop_footer_branch
    %8 = sbr.rel target = $region3
  $region8: #{bert_mlp_forward.11} parent=0 // loop_exit
    _

// kernel: bert_mlp_forward.12
$region0: #{bert_mlp_forward.12}
  #allocation0 [shape = 'u32[]', space=smem, size = 0x4, offset = 0x4, fixed_abs, tag = 'smem constant byte address 0x4 - core index']
  #allocation1 [shape = 'u32[144,128]{1,0:T(1,128)}', space=vmem, size = 0x12000, scoped, tag = 'internal scratch']
  %s0 = inlined_call_operand.vmem [shape: f32[2,8,192], index: 0, kind: input, shape index: {}]
  %s1 = inlined_call_operand.vmem [shape: f32[2,1,8], index: 1, kind: input, shape index: {}]
  %s2 = inlined_call_operand.vmem [shape: f32[2,8,64], index: 2, kind: output, shape index: {}]
  %s3 = sld [smem:[#allocation0]]
  $region41: #{bert_mlp_forward.12} parent=0
    _
  %s5 = ssub.s32 1, %s3
  %s6 = scalar_select 0, %s5, %s3
  loop: start=0, step=1, limit=4
  $region2: #{bert_mlp_forward.12} parent=0 // loop_pre_header
    _
  $region3: #{bert_mlp_forward.12} parent=0 // loop_header
    %s8 = sphi 0, %s12
    %p9 = scmp.ge.s32.totalorder %s8, 4
    %s18 = sphi 0, %s20
    %s21 = sphi 0, %s18
    %s22 = sphi 0, %s21
    %s38 = sphi 0, %s22
    %s44 = sphi 0, %s46
    %s47 = sphi 0, %s44
    %s48 = sphi 0, %s47
    %s64 = sphi 0, %s48
    %s70 = sphi 0, %s72
    %s73 = sphi 0, %s70
    %s74 = sphi 0, %s73
    %s90 = sphi 0, %s74
  $region4: #{bert_mlp_forward.12} parent=0 // loop_header_branch
    %11 = sbr.rel (%p9) target = $region8
  $region5: #{bert_mlp_forward.12} parent=0 // loop_body
    %s13 = ssub.s32 %s8, 1
    %s14 = ssub.s32 %s8, 2
    %s15 = sadd.s32 %s8, 1
    %s16 = ssub.s32 %s8, %s15
    %p17 = scmp.eq.s32.totalorder %s16, 0
    %s19 = sadd.s32 %s18, 1
    %s20 = scalar_select %p17, %s18, %s19
    %p23 = pneg %p17
    %p24 = scmp.eq.s32.totalorder %s8, 1
    %p25 = por %p23, %p24
    %p26 = scmp.ne.s32.totalorder %s18, %s21
    %p27 = scmp.eq.s32.totalorder %s8, 0
    %p28 = por %p26, %p27
    %p29 = scmp.ne.s32.totalorder %s18, %s21
    %p30 = scmp.eq.s32.totalorder %s13, 1
    %p31 = por %p29, %p30
    %p32 = scmp.ne.s32.totalorder %s21, %s22
    %p33 = scmp.eq.s32.totalorder %s13, 0
    %p34 = por %p32, %p33
    %p35 = scmp.ne.s32.totalorder %s21, %s22
    %p36 = scmp.eq.s32.totalorder %s14, 1
    %p37 = por %p35, %p36
    %p39 = scmp.ne.s32.totalorder %s22, %s38
    %p40 = scmp.eq.s32.totalorder %s14, 0
    %p41 = por %p39, %p40
    %s42 = ssub.s32 %s8, %s15
    %p43 = scmp.eq.s32.totalorder %s42, 0
    %s45 = sadd.s32 %s44, 1
    %s46 = scalar_select %p43, %s44, %s45
    %p49 = pneg %p43
    %p50 = scmp.eq.s32.totalorder %s8, 1
    %p51 = por %p49, %p50
    %p52 = scmp.ne.s32.totalorder %s44, %s47
    %p53 = scmp.eq.s32.totalorder %s8, 0
    %p54 = por %p52, %p53
    %p55 = scmp.ne.s32.totalorder %s44, %s47
    %p56 = scmp.eq.s32.totalorder %s13, 1
    %p57 = por %p55, %p56
    %p58 = scmp.ne.s32.totalorder %s47, %s48
    %p59 = scmp.eq.s32.totalorder %s13, 0
    %p60 = por %p58, %p59
    %p61 = scmp.ne.s32.totalorder %s47, %s48
    %p62 = scmp.eq.s32.totalorder %s14, 1
    %p63 = por %p61, %p62
    %p65 = scmp.ne.s32.totalorder %s48, %s64
    %p66 = scmp.eq.s32.totalorder %s14, 0
    %p67 = por %p65, %p66
    %s68 = ssub.s32 %s8, %s15
    %p69 = scmp.eq.s32.totalorder %s68, 0
    %s71 = sadd.s32 %s70, 1
    %s72 = scalar_select %p69, %s70, %s71
    %p75 = pneg %p69
    %p76 = scmp.eq.s32.totalorder %s8, 1
    %p77 = por %p75, %p76
    %p78 = scmp.ne.s32.totalorder %s70, %s73
    %p79 = scmp.eq.s32.totalorder %s8, 0
    %p80 = por %p78, %p79
    %p81 = scmp.ne.s32.totalorder %s70, %s73
    %p82 = scmp.eq.s32.totalorder %s13, 1
    %p83 = por %p81, %p82
    %p84 = scmp.ne.s32.totalorder %s73, %s74
    %p85 = scmp.eq.s32.totalorder %s13, 0
    %p86 = por %p84, %p85
    %p87 = scmp.ne.s32.totalorder %s73, %s74
    %p88 = scmp.eq.s32.totalorder %s14, 1
    %p89 = por %p87, %p88
    %p91 = scmp.ne.s32.totalorder %s74, %s90
    %p92 = scmp.eq.s32.totalorder %s14, 0
    %p93 = por %p91, %p92
    %p94 = scmp.le.s32.totalorder 1, %s8
    %p95 = scmp.lt.s32.totalorder %s8, 3
    %p96 = pnand %p94, %p95
    %p97 = pneg %p96
    // Predicated region
    $region9: #{bert_mlp_forward.12} parent=5 // pred_check
      _
    $region10: #{bert_mlp_forward.12} parent=5 // pred_check_branch
      %99 = sbr.rel (%p96) target = $region12
    $region11: #{bert_mlp_forward.12} parent=5 // pred_region
      %s100 = ssub.s32 %s8, 1
    $region12: #{bert_mlp_forward.12} parent=5 // pred_fallthru
      _
    %p101 = scmp.lt.s32.totalorder %s8, 2
    // Predicated region
    $region13: #{bert_mlp_forward.12} parent=5 // pred_check
      %p102 = pneg %p101
    $region14: #{bert_mlp_forward.12} parent=5 // pred_check_branch
      %104 = sbr.rel (%p102) target = $region16
    $region15: #{bert_mlp_forward.12} parent=5 // pred_region
      // Predicated region
      $region17: #{bert_mlp_forward.12} parent=15 // pred_check
        %p105 = pneg %p28
      $region18: #{bert_mlp_forward.12} parent=15 // pred_check_branch
        %107 = sbr.rel (%p105) target = $region20
      $region19: #{bert_mlp_forward.12} parent=15 // pred_region
        %p108 = scmp.lt.s32.totalorder %s8, 1
        %s109 = scalar_select %p108, %s8, 1
        %s110 = smul.addr %s109, 2
        %s111 = smul.addr %s110, 8
        %s112 = scalar_lea.vmem %s0, %s111
      $region20: #{bert_mlp_forward.12} parent=15 // pred_fallthru
        _
      // Predicated region
      $region21: #{bert_mlp_forward.12} parent=15 // pred_check
        %p113 = pneg %p54
      $region22: #{bert_mlp_forward.12} parent=15 // pred_check_branch
        %115 = sbr.rel (%p113) target = $region24
      $region23: #{bert_mlp_forward.12} parent=15 // pred_region
        %p116 = scmp.lt.s32.totalorder %s8, 1
        %s117 = scalar_select %p116, %s8, 1
        %s118 = scalar_lea.vmem %s1, %s117
      $region24: #{bert_mlp_forward.12} parent=15 // pred_fallthru
        _
    $region16: #{bert_mlp_forward.12} parent=5 // pred_fallthru
      _
    %p119 = scmp.le.s32.totalorder 1, %s8
    %p120 = scmp.lt.s32.totalorder %s8, 3
    %p121 = pnand %p119, %p120
    %p122 = pneg %p121
    // Predicated region
    $region25: #{bert_mlp_forward.12} parent=5 // pred_check
      _
    $region26: #{bert_mlp_forward.12} parent=5 // pred_check_branch
      %124 = sbr.rel (%p121) target = $region28
    $region27: #{bert_mlp_forward.12} parent=5 // pred_region
      %s125 = ssub.s32 %s8, 1
      %p126 = scmp.lt.s32.totalorder %s13, 1
      %s127 = scalar_select %p126, %s13, 1
      %s128 = smul.addr %s127, 2
      %s129 = smul.addr %s128, 8
      %s130 = scalar_lea.vmem %s0, %s129
      %p131 = pneg %p34
      %p132 = pneg %p31
      %p133 = scmp.lt.s32.totalorder %s13, 1
      %s134 = scalar_select %p133, %s13, 1
      %s135 = scalar_lea.vmem %s1, %s134
      %p136 = pneg %p60
      %p137 = pneg %p57
      %p138 = pneg %p86
      %p139 = pneg %p83
      %p140 = scmp.lt.s32.totalorder %s13, 1
      %s141 = scalar_select %p140, %s13, 1
      %s142 = smul.addr %s141, 8
      %s143 = scalar_lea.vmem %s2, %s142
      %p144 = scmp.lt.s32.totalorder %s13, 1
      %s145 = scalar_select %p144, %s13, 1
      %s146 = smul.addr %s145, 2
      %s147 = smul.addr %s146, 8
      %s148 = scalar_lea.vmem %s0, %s147
      %p149 = scmp.lt.s32.totalorder %s13, 1
      %s150 = scalar_select %p149, %s13, 1
      %s151 = scalar_lea.vmem %s1, %s150
      %p152 = scmp.lt.s32.totalorder %s13, 1
      %s153 = scalar_select %p152, %s13, 1
      %s154 = smul.addr %s153, 8
      %s155 = scalar_lea.vmem %s2, %s154
      %v157 = vld [vmem:[%s148] sm:$0xff]
      %v158 = vld [vmem:[%s148 + $0x8] sm:$0xff]
      %v159 = vld [vmem:[%s151] sm:$0x1]
      %v160 = vmul.f32 %v157, 0.17677669
      %v161 = vpack.c.bf16 %v160, %v160
      %v162 = vpack.c.bf16 %v157, %v157
      %v163 = vpack.c.bf16 %v158, %v158
      %v165 = vlaneseq
      %v166 = vshrl.u32 %v165, 7
      %v167 = vsub.s32 0, %v166
      %v168 = vrot.slane %v159, %v167
      %171 = vrot.lane.b32.xlu0 %v162, 64
      %v172 = vpop.permute.xlu0 %171
      %vm173 = vcmask 261120
      %v175 = vsel %vm173, %v161, 0
      %v178 = vsel %vm173, %v172, 0
      %180 = vmatprep.subr.bf16.mxu0 0
      %181 = vmatpush1.bf16.xpose.msra.mxu0 0
      %182 = vmatprep.subr.bf16.mxu0 0
      %183 = vmatpush1.bf16.xpose.msra.mxu0 0
      %184 = vmatprep.subr.bf16.mxu0 0
      %185 = vmatpush1.bf16.xpose.msra.mxu0 0
      %186 = vmatprep.subr.bf16.mxu0 0
      %187 = vmatpush1.bf16.xpose.msra.mxu0 0
      %188 = vmatprep.subr.bf16.mxu0 0
      %189 = vmatpush1.bf16.xpose.msra.mxu0 0
      %190 = vmatprep.subr.bf16.mxu0 0
      %191 = vmatpush1.bf16.xpose.msra.mxu0 0
      %192 = vmatprep.subr.bf16.mxu0 0
      %193 = vmatpush1.bf16.xpose.msra.mxu0 0
      %194 = vmatprep.subr.bf16.mxu0 0
      %195 = vmatpush1.bf16.xpose.msra.mxu0 %v178
      %196 = vmatprep.subr.bf16.mxu0 0
      %197 = vmatpush2.bf16.xpose.msra.mxu0 0
      %198 = vmatprep.subr.bf16.mxu0 0
      %199 = vmatpush2.bf16.xpose.msra.mxu0 0
      %200 = vmatprep.subr.bf16.mxu0 0
      %201 = vmatpush2.bf16.xpose.msra.mxu0 0
      %202 = vmatprep.subr.bf16.mxu0 0
      %203 = vmatpush2.bf16.xpose.msra.mxu0 0
      %204 = vmatprep.subr.bf16.mxu0 0
      %205 = vmatpush2.bf16.xpose.msra.mxu0 0
      %206 = vmatprep.subr.bf16.mxu0 0
      %207 = vmatpush2.bf16.xpose.msra.mxu0 0
      %208 = vmatprep.subr.bf16.mxu0 0
      %209 = vmatpush2.bf16.xpose.msra.mxu0 0
      %210 = vmatprep.subr.bf16.mxu0 0
      %211 = vmatpush2.bf16.xpose.msra.mxu0 0
      %212 = vmatprep.mubr.bf16.mxu0 0
      %213 = vmatmul.mubr.bf16.gmra.mxu0 %v175
      %v214 = vpop.f32.mrf.mxu0
      %v215 = vadd.f32 %v168, %v214
      %v216 = vpop.f32.mrf.mxu0
      %v217 = vpop.f32.mrf.mxu0
      %v218 = vpop.f32.mrf.mxu0
      %219 = vdwg.mxu0
      %vm220 = vcmask 64512
      %v221 = vsel %vm220, %v215, -inf
      %222 = vmax.xlane.f32.xlu0 %v221
      %v223 = vpop.xlane.xlu0 %222
      %v224 = vsub.f32 %v215, %v223
      %v225 = vmul.f32 %v224, 1.442695
      %v226 = vpow.pop %v225
      %v227 = vsel %vm220, %v226, 0.0
      %228 = vadd.xlane.f32.xlu0 %v227
      %v229 = vpop.xlane.xlu0 %228
      %v230 = vrcp.pop %v229
      %v231 = vmul.f32 %v226, %v230
      %v232 = vpack.c.bf16 %v231, %v231
      %v234 = vsel %vm220, %v232, 0
      %vm236 = vcmask 1043456
      %v238 = vsel %vm236, %v163, 0
      %240 = vmatprep.subr.bf16.mxu0 0
      %241 = vmatpush1.bf16.msra.mxu0 0
      %242 = vmatprep.subr.bf16.mxu0 0
      %243 = vmatpush1.bf16.msra.mxu0 0
      %244 = vmatprep.subr.bf16.mxu0 0
      %245 = vmatpush1.bf16.msra.mxu0 0
      %246 = vmatprep.subr.bf16.mxu0 0
      %247 = vmatpush1.bf16.msra.mxu0 0
      %248 = vmatprep.subr.bf16.mxu0 0
      %249 = vmatpush1.bf16.msra.mxu0 0
      %250 = vmatprep.subr.bf16.mxu0 0
      %251 = vmatpush1.bf16.msra.mxu0 0
      %252 = vmatprep.subr.bf16.mxu0 0
      %253 = vmatpush1.bf16.msra.mxu0 0
      %254 = vmatprep.subr.bf16.mxu0 0
      %255 = vmatpush1.bf16.msra.mxu0 %v238
      %256 = vmatprep.subr.bf16.mxu0 0
      %257 = vmatpush2.bf16.msra.mxu0 0
      %258 = vmatprep.subr.bf16.mxu0 0
      %259 = vmatpush2.bf16.msra.mxu0 0
      %260 = vmatprep.subr.bf16.mxu0 0
      %261 = vmatpush2.bf16.msra.mxu0 0
      %262 = vmatprep.subr.bf16.mxu0 0
      %263 = vmatpush2.bf16.msra.mxu0 0
      %264 = vmatprep.subr.bf16.mxu0 0
      %265 = vmatpush2.bf16.msra.mxu0 0
      %266 = vmatprep.subr.bf16.mxu0 0
      %267 = vmatpush2.bf16.msra.mxu0 0
      %268 = vmatprep.subr.bf16.mxu0 0
      %269 = vmatpush2.bf16.msra.mxu0 0
      %270 = vmatprep.subr.bf16.mxu0 0
      %271 = vmatpush2.bf16.msra.mxu0 0
      %272 = vmatprep.mubr.bf16.mxu0 0
      %273 = vmatmul.mubr.bf16.gmra.mxu0 %v234
      %v274 = vpop.f32.mrf.mxu0
      %v275 = vadd.f32 0.0, %v274
      %v276 = vpop.f32.mrf.mxu0
      %v277 = vpop.f32.mrf.mxu0
      %v278 = vpop.f32.mrf.mxu0
      %279 = vdwg.mxu0
      %281 = vrot.lane.b32.xlu0 %v161, 96
      %v282 = vpop.permute.xlu0 %281
      %283 = vrot.lane.b32.xlu0 %v162, 32
      %v284 = vpop.permute.xlu0 %283
      %v286 = vsel %vm173, %v282, 0
      %v289 = vsel %vm173, %v284, 0
      %291 = vmatprep.subr.bf16.mxu0 0
      %292 = vmatpush1.bf16.xpose.msra.mxu0 0
      %293 = vmatprep.subr.bf16.mxu0 0
      %294 = vmatpush1.bf16.xpose.msra.mxu0 0
      %295 = vmatprep.subr.bf16.mxu0 0
      %296 = vmatpush1.bf16.xpose.msra.mxu0 0
      %297 = vmatprep.subr.bf16.mxu0 0
      %298 = vmatpush1.bf16.xpose.msra.mxu0 0
      %299 = vmatprep.subr.bf16.mxu0 0
      %300 = vmatpush1.bf16.xpose.msra.mxu0 0
      %301 = vmatprep.subr.bf16.mxu0 0
      %302 = vmatpush1.bf16.xpose.msra.mxu0 0
      %303 = vmatprep.subr.bf16.mxu0 0
      %304 = vmatpush1.bf16.xpose.msra.mxu0 0
      %305 = vmatprep.subr.bf16.mxu0 0
      %306 = vmatpush1.bf16.xpose.msra.mxu0 %v289
      %307 = vmatprep.subr.bf16.mxu0 0
      %308 = vmatpush2.bf16.xpose.msra.mxu0 0
      %309 = vmatprep.subr.bf16.mxu0 0
      %310 = vmatpush2.bf16.xpose.msra.mxu0 0
      %311 = vmatprep.subr.bf16.mxu0 0
      %312 = vmatpush2.bf16.xpose.msra.mxu0 0
      %313 = vmatprep.subr.bf16.mxu0 0
      %314 = vmatpush2.bf16.xpose.msra.mxu0 0
      %315 = vmatprep.subr.bf16.mxu0 0
      %316 = vmatpush2.bf16.xpose.msra.mxu0 0
      %317 = vmatprep.subr.bf16.mxu0 0
      %318 = vmatpush2.bf16.xpose.msra.mxu0 0
      %319 = vmatprep.subr.bf16.mxu0 0
      %320 = vmatpush2.bf16.xpose.msra.mxu0 0
      %321 = vmatprep.subr.bf16.mxu0 0
      %322 = vmatpush2.bf16.xpose.msra.mxu0 0
      %323 = vmatprep.mubr.bf16.mxu0 0
      %324 = vmatmul.mubr.bf16.gmra.mxu0 %v286
      %v325 = vpop.f32.mrf.mxu0
      %v326 = vadd.f32 %v168, %v325
      %v327 = vpop.f32.mrf.mxu0
      %v328 = vpop.f32.mrf.mxu0
      %v329 = vpop.f32.mrf.mxu0
      %330 = vdwg.mxu0
      %v331 = vsel %vm220, %v326, -inf
      %332 = vmax.xlane.f32.xlu0 %v331
      %v333 = vpop.xlane.xlu0 %332
      %v334 = vsub.f32 %v326, %v333
      %v335 = vmul.f32 %v334, 1.442695
      %v336 = vpow.pop %v335
      %v337 = vsel %vm220, %v336, 0.0
      %338 = vadd.xlane.f32.xlu0 %v337
      %v339 = vpop.xlane.xlu0 %338
      %v340 = vrcp.pop %v339
      %v341 = vmul.f32 %v336, %v340
      %v342 = vpack.c.bf16 %v341, %v341
      %344 = vrot.lane.b32.xlu0 %v163, 96
      %v345 = vpop.permute.xlu0 %344
      %v347 = vsel %vm220, %v342, 0
      %v350 = vsel %vm236, %v345, 0
      %352 = vmatprep.subr.bf16.mxu0 0
      %353 = vmatpush1.bf16.msra.mxu0 0
      %354 = vmatprep.subr.bf16.mxu0 0
      %355 = vmatpush1.bf16.msra.mxu0 0
      %356 = vmatprep.subr.bf16.mxu0 0
      %357 = vmatpush1.bf16.msra.mxu0 0
      %358 = vmatprep.subr.bf16.mxu0 0
      %359 = vmatpush1.bf16.msra.mxu0 0
      %360 = vmatprep.subr.bf16.mxu0 0
      %361 = vmatpush1.bf16.msra.mxu0 0
      %362 = vmatprep.subr.bf16.mxu0 0
      %363 = vmatpush1.bf16.msra.mxu0 0
      %364 = vmatprep.subr.bf16.mxu0 0
      %365 = vmatpush1.bf16.msra.mxu0 0
      %366 = vmatprep.subr.bf16.mxu0 0
      %367 = vmatpush1.bf16.msra.mxu0 %v350
      %368 = vmatprep.subr.bf16.mxu0 0
      %369 = vmatpush2.bf16.msra.mxu0 0
      %370 = vmatprep.subr.bf16.mxu0 0
      %371 = vmatpush2.bf16.msra.mxu0 0
      %372 = vmatprep.subr.bf16.mxu0 0
      %373 = vmatpush2.bf16.msra.mxu0 0
      %374 = vmatprep.subr.bf16.mxu0 0
      %375 = vmatpush2.bf16.msra.mxu0 0
      %376 = vmatprep.subr.bf16.mxu0 0
      %377 = vmatpush2.bf16.msra.mxu0 0
      %378 = vmatprep.subr.bf16.mxu0 0
      %379 = vmatpush2.bf16.msra.mxu0 0
      %380 = vmatprep.subr.bf16.mxu0 0
      %381 = vmatpush2.bf16.msra.mxu0 0
      %382 = vmatprep.subr.bf16.mxu0 0
      %383 = vmatpush2.bf16.msra.mxu0 0
      %384 = vmatprep.mubr.bf16.mxu0 0
      %385 = vmatmul.mubr.bf16.gmra.mxu0 %v347
      %v386 = vpop.f32.mrf.mxu0
      %v387 = vadd.f32 0.0, %v386
      %v388 = vpop.f32.mrf.mxu0
      %v389 = vpop.f32.mrf.mxu0
      %v390 = vpop.f32.mrf.mxu0
      %391 = vdwg.mxu0
      %393 = vrot.lane.b32.xlu0 %v387, 32
      %v394 = vpop.permute.xlu0 %393
      %v396 = vsel %vm173, %v275, %v394
      %vm397 = vcmask 523264
      %398 = vst.msk [vmem:[%s155] sm:$0xff] %vm397, %v396
      %p399 = scmp.lt.s32.totalorder %s13, 1
      %s400 = scalar_select %p399, %s13, 1
      %s401 = smul.addr %s400, 8
      %s402 = scalar_lea.vmem %s2, %s401
      // Predicated region
      $region29: #{bert_mlp_forward.12} parent=27 // pred_check
        %p403 = pneg %p83
      $region30: #{bert_mlp_forward.12} parent=27 // pred_check_branch
        %405 = sbr.rel (%p403) target = $region32
      $region31: #{bert_mlp_forward.12} parent=27 // pred_region
        _
      $region32: #{bert_mlp_forward.12} parent=27 // pred_fallthru
        _
    $region28: #{bert_mlp_forward.12} parent=5 // pred_fallthru
      _
    %p406 = scmp.le.s32.totalorder 2, %s8
    // Predicated region
    $region33: #{bert_mlp_forward.12} parent=5 // pred_check
      %p407 = pneg %p406
    $region34: #{bert_mlp_forward.12} parent=5 // pred_check_branch
      %409 = sbr.rel (%p407) target = $region36
    $region35: #{bert_mlp_forward.12} parent=5 // pred_region
      %s410 = ssub.s32 %s8, 2
      // Predicated region
      $region37: #{bert_mlp_forward.12} parent=35 // pred_check
        %p411 = pneg %p89
      $region38: #{bert_mlp_forward.12} parent=35 // pred_check_branch
        %413 = sbr.rel (%p411) target = $region40
      $region39: #{bert_mlp_forward.12} parent=35 // pred_region
        %p414 = scmp.lt.s32.totalorder %s14, 1
        %s415 = scalar_select %p414, %s14, 1
        %s416 = smul.addr %s415, 8
        %s417 = scalar_lea.vmem %s2, %s416
      $region40: #{bert_mlp_forward.12} parent=35 // pred_fallthru
        _
    $region36: #{bert_mlp_forward.12} parent=5 // pred_fallthru
      _
  $region6: #{bert_mlp_forward.12} parent=0 // loop_footer
    %s12 = sadd.s32 1, %s8
  $region7: #{bert_mlp_forward.12} parent=0 // loop_footer_branch
    %7 = sbr.rel target = $region3
  $region8: #{bert_mlp_forward.12} parent=0 // loop_exit
    _

// kernel: bert_mlp_forward.13
$region0: #{bert_mlp_forward.13}
  #allocation0 [shape = 'u32[]', space=smem, size = 0x4, offset = 0x4, fixed_abs, tag = 'smem constant byte address 0x4 - core index']
  #allocation1 [shape = 'u32[144,128]{1,0:T(1,128)}', space=vmem, size = 0x12000, scoped, tag = 'internal scratch']
  %s0 = inlined_call_operand.vmem [shape: f32[16,64], index: 0, kind: input, shape index: {}]
  %s1 = inlined_call_operand.vmem [shape: f32[16,64], index: 1, kind: input, shape index: {}]
  %s2 = inlined_call_operand.vmem [shape: bf16[64,64], index: 2, kind: input, shape index: {}]
  %s3 = inlined_call_operand.vmem [shape: f32[1,64], index: 3, kind: input, shape index: {}]
  %s4 = inlined_call_operand.vmem [shape: f32[1,64], index: 4, kind: input, shape index: {}]
  %s5 = inlined_call_operand.vmem [shape: f32[1,64], index: 5, kind: input, shape index: {}]
  %s6 = inlined_call_operand.vmem [shape: f32[16,64], index: 6, kind: output, shape index: {}]
  %s7 = sld [smem:[#allocation0]]
  $region57: #{bert_mlp_forward.13} parent=0
    _
  %s9 = ssub.s32 1, %s7
  %s10 = scalar_select 0, %s9, %s7
  loop: start=0, step=1, limit=4
  $region2: #{bert_mlp_forward.13} parent=0 // loop_pre_header
    _
  $region3: #{bert_mlp_forward.13} parent=0 // loop_header
    %s12 = sphi 0, %s16
    %p13 = scmp.ge.s32.totalorder %s12, 4
    %s22 = sphi 0, %s24
    %s25 = sphi 0, %s22
    %s26 = sphi 0, %s25
    %s42 = sphi 0, %s26
    %s48 = sphi 0, %s50
    %s51 = sphi 0, %s48
    %s52 = sphi 0, %s51
    %s68 = sphi 0, %s52
    %s72 = sphi 0, %s72
    %s74 = sphi 0, %s72
    %s75 = sphi 0, %s74
    %s89 = sphi 0, %s75
    %s93 = sphi 0, %s93
    %s95 = sphi 0, %s93
    %s96 = sphi 0, %s95
    %s110 = sphi 0, %s96
    %s114 = sphi 0, %s114
    %s116 = sphi 0, %s114
    %s117 = sphi 0, %s116
    %s131 = sphi 0, %s117
    %s135 = sphi 0, %s135
    %s137 = sphi 0, %s135
    %s138 = sphi 0, %s137
    %s152 = sphi 0, %s138
    %s158 = sphi 0, %s160
    %s161 = sphi 0, %s158
    %s162 = sphi 0, %s161
    %s178 = sphi 0, %s162
  $region4: #{bert_mlp_forward.13} parent=0 // loop_header_branch
    %15 = sbr.rel (%p13) target = $region8
  $region5: #{bert_mlp_forward.13} parent=0 // loop_body
    %s17 = ssub.s32 %s12, 1
    %s18 = ssub.s32 %s12, 2
    %s19 = sadd.s32 %s12, 1
    %s20 = ssub.s32 %s12, %s19
    %p21 = scmp.eq.s32.totalorder %s20, 0
    %s23 = sadd.s32 %s22, 1
    %s24 = scalar_select %p21, %s22, %s23
    %p27 = pneg %p21
    %p28 = scmp.eq.s32.totalorder %s12, 1
    %p29 = por %p27, %p28
    %p30 = scmp.ne.s32.totalorder %s22, %s25
    %p31 = scmp.eq.s32.totalorder %s12, 0
    %p32 = por %p30, %p31
    %p33 = scmp.ne.s32.totalorder %s22, %s25
    %p34 = scmp.eq.s32.totalorder %s17, 1
    %p35 = por %p33, %p34
    %p36 = scmp.ne.s32.totalorder %s25, %s26
    %p37 = scmp.eq.s32.totalorder %s17, 0
    %p38 = por %p36, %p37
    %p39 = scmp.ne.s32.totalorder %s25, %s26
    %p40 = scmp.eq.s32.totalorder %s18, 1
    %p41 = por %p39, %p40
    %p43 = scmp.ne.s32.totalorder %s26, %s42
    %p44 = scmp.eq.s32.totalorder %s18, 0
    %p45 = por %p43, %p44
    %s46 = ssub.s32 %s12, %s19
    %p47 = scmp.eq.s32.totalorder %s46, 0
    %s49 = sadd.s32 %s48, 1
    %s50 = scalar_select %p47, %s48, %s49
    %p53 = pneg %p47
    %p54 = scmp.eq.s32.totalorder %s12, 1
    %p55 = por %p53, %p54
    %p56 = scmp.ne.s32.totalorder %s48, %s51
    %p57 = scmp.eq.s32.totalorder %s12, 0
    %p58 = por %p56, %p57
    %p59 = scmp.ne.s32.totalorder %s48, %s51
    %p60 = scmp.eq.s32.totalorder %s17, 1
    %p61 = por %p59, %p60
    %p62 = scmp.ne.s32.totalorder %s51, %s52
    %p63 = scmp.eq.s32.totalorder %s17, 0
    %p64 = por %p62, %p63
    %p65 = scmp.ne.s32.totalorder %s51, %s52
    %p66 = scmp.eq.s32.totalorder %s18, 1
    %p67 = por %p65, %p66
    %p69 = scmp.ne.s32.totalorder %s52, %s68
    %p70 = scmp.eq.s32.totalorder %s18, 0
    %p71 = por %p69, %p70
    %s73 = sadd.s32 %s72, 1
    %p76 = scmp.eq.s32.totalorder %s12, 1
    %p77 = scmp.ne.s32.totalorder %s72, %s74
    %p78 = scmp.eq.s32.totalorder %s12, 0
    %p79 = por %p77, %p78
    %p80 = scmp.ne.s32.totalorder %s72, %s74
    %p81 = scmp.eq.s32.totalorder %s17, 1
    %p82 = por %p80, %p81
    %p83 = scmp.ne.s32.totalorder %s74, %s75
    %p84 = scmp.eq.s32.totalorder %s17, 0
    %p85 = por %p83, %p84
    %p86 = scmp.ne.s32.totalorder %s74, %s75
    %p87 = scmp.eq.s32.totalorder %s18, 1
    %p88 = por %p86, %p87
    %p90 = scmp.ne.s32.totalorder %s75, %s89
    %p91 = scmp.eq.s32.totalorder %s18, 0
    %p92 = por %p90, %p91
    %s94 = sadd.s32 %s93, 1
    %p97 = scmp.eq.s32.totalorder %s12, 1
    %p98 = scmp.ne.s32.totalorder %s93, %s95
    %p99 = scmp.eq.s32.totalorder %s12, 0
    %p100 = por %p98, %p99
    %p101 = scmp.ne.s32.totalorder %s93, %s95
    %p102 = scmp.eq.s32.totalorder %s17, 1
    %p103 = por %p101, %p102
    %p104 = scmp.ne.s32.totalorder %s95, %s96
    %p105 = scmp.eq.s32.totalorder %s17, 0
    %p106 = por %p104, %p105
    %p107 = scmp.ne.s32.totalorder %s95, %s96
    %p108 = scmp.eq.s32.totalorder %s18, 1
    %p109 = por %p107, %p108
    %p111 = scmp.ne.s32.totalorder %s96, %s110
    %p112 = scmp.eq.s32.totalorder %s18, 0
    %p113 = por %p111, %p112
    %s115 = sadd.s32 %s114, 1
    %p118 = scmp.eq.s32.totalorder %s12, 1
    %p119 = scmp.ne.s32.totalorder %s114, %s116
    %p120 = scmp.eq.s32.totalorder %s12, 0
    %p121 = por %p119, %p120
    %p122 = scmp.ne.s32.totalorder %s114, %s116
    %p123 = scmp.eq.s32.totalorder %s17, 1
    %p124 = por %p122, %p123
    %p125 = scmp.ne.s32.totalorder %s116, %s117
    %p126 = scmp.eq.s32.totalorder %s17, 0
    %p127 = por %p125, %p126
    %p128 = scmp.ne.s32.totalorder %s116, %s117
    %p129 = scmp.eq.s32.totalorder %s18, 1
    %p130 = por %p128, %p129
    %p132 = scmp.ne.s32.totalorder %s117, %s131
    %p133 = scmp.eq.s32.totalorder %s18, 0
    %p134 = por %p132, %p133
    %s136 = sadd.s32 %s135, 1
    %p139 = scmp.eq.s32.totalorder %s12, 1
    %p140 = scmp.ne.s32.totalorder %s135, %s137
    %p141 = scmp.eq.s32.totalorder %s12, 0
    %p142 = por %p140, %p141
    %p143 = scmp.ne.s32.totalorder %s135, %s137
    %p144 = scmp.eq.s32.totalorder %s17, 1
    %p145 = por %p143, %p144
    %p146 = scmp.ne.s32.totalorder %s137, %s138
    %p147 = scmp.eq.s32.totalorder %s17, 0
    %p148 = por %p146, %p147
    %p149 = scmp.ne.s32.totalorder %s137, %s138
    %p150 = scmp.eq.s32.totalorder %s18, 1
    %p151 = por %p149, %p150
    %p153 = scmp.ne.s32.totalorder %s138, %s152
    %p154 = scmp.eq.s32.totalorder %s18, 0
    %p155 = por %p153, %p154
    %s156 = ssub.s32 %s12, %s19
    %p157 = scmp.eq.s32.totalorder %s156, 0
    %s159 = sadd.s32 %s158, 1
    %s160 = scalar_select %p157, %s158, %s159
    %p163 = pneg %p157
    %p164 = scmp.eq.s32.totalorder %s12, 1
    %p165 = por %p163, %p164
    %p166 = scmp.ne.s32.totalorder %s158, %s161
    %p167 = scmp.eq.s32.totalorder %s12, 0
    %p168 = por %p166, %p167
    %p169 = scmp.ne.s32.totalorder %s158, %s161
    %p170 = scmp.eq.s32.totalorder %s17, 1
    %p171 = por %p169, %p170
    %p172 = scmp.ne.s32.totalorder %s161, %s162
    %p173 = scmp.eq.s32.totalorder %s17, 0
    %p174 = por %p172, %p173
    %p175 = scmp.ne.s32.totalorder %s161, %s162
    %p176 = scmp.eq.s32.totalorder %s18, 1
    %p177 = por %p175, %p176
    %p179 = scmp.ne.s32.totalorder %s162, %s178
    %p180 = scmp.eq.s32.totalorder %s18, 0
    %p181 = por %p179, %p180
    %p182 = scmp.le.s32.totalorder 1, %s12
    %p183 = scmp.lt.s32.totalorder %s12, 3
    %p184 = pnand %p182, %p183
    %p185 = pneg %p184
    // Predicated region
    $region9: #{bert_mlp_forward.13} parent=5 // pred_check
      _
    $region10: #{bert_mlp_forward.13} parent=5 // pred_check_branch
      %187 = sbr.rel (%p184) target = $region12
    $region11: #{bert_mlp_forward.13} parent=5 // pred_region
      %s188 = ssub.s32 %s12, 1
      // Predicated region
      $region13: #{bert_mlp_forward.13} parent=11 // pred_check
        %p189 = pneg %p85
      $region14: #{bert_mlp_forward.13} parent=11 // pred_check_branch
        %191 = sbr.rel (%p189) target = $region16
      $region15: #{bert_mlp_forward.13} parent=11 // pred_region
        _
      $region16: #{bert_mlp_forward.13} parent=11 // pred_fallthru
        _
      // Predicated region
      $region17: #{bert_mlp_forward.13} parent=11 // pred_check
        %p192 = pneg %p106
      $region18: #{bert_mlp_forward.13} parent=11 // pred_check_branch
        %194 = sbr.rel (%p192) target = $region20
      $region19: #{bert_mlp_forward.13} parent=11 // pred_region
        _
      $region20: #{bert_mlp_forward.13} parent=11 // pred_fallthru
        _
      // Predicated region
      $region21: #{bert_mlp_forward.13} parent=11 // pred_check
        %p195 = pneg %p127
      $region22: #{bert_mlp_forward.13} parent=11 // pred_check_branch
        %197 = sbr.rel (%p195) target = $region24
      $region23: #{bert_mlp_forward.13} parent=11 // pred_region
        _
      $region24: #{bert_mlp_forward.13} parent=11 // pred_fallthru
        _
      // Predicated region
      $region25: #{bert_mlp_forward.13} parent=11 // pred_check
        %p198 = pneg %p148
      $region26: #{bert_mlp_forward.13} parent=11 // pred_check_branch
        %200 = sbr.rel (%p198) target = $region28
      $region27: #{bert_mlp_forward.13} parent=11 // pred_region
        _
      $region28: #{bert_mlp_forward.13} parent=11 // pred_fallthru
        _
    $region12: #{bert_mlp_forward.13} parent=5 // pred_fallthru
      _
    %p201 = scmp.lt.s32.totalorder %s12, 2
    // Predicated region
    $region29: #{bert_mlp_forward.13} parent=5 // pred_check
      %p202 = pneg %p201
    $region30: #{bert_mlp_forward.13} parent=5 // pred_check_branch
      %204 = sbr.rel (%p202) target = $region32
    $region31: #{bert_mlp_forward.13} parent=5 // pred_region
      // Predicated region
      $region33: #{bert_mlp_forward.13} parent=31 // pred_check
        %p205 = pneg %p32
      $region34: #{bert_mlp_forward.13} parent=31 // pred_check_branch
        %207 = sbr.rel (%p205) target = $region36
      $region35: #{bert_mlp_forward.13} parent=31 // pred_region
        %p208 = scmp.lt.s32.totalorder %s12, 1
        %s209 = scalar_select %p208, %s12, 1
        %s210 = smul.addr %s209, 8
        %s211 = scalar_lea.vmem %s0, %s210
      $region36: #{bert_mlp_forward.13} parent=31 // pred_fallthru
        _
      // Predicated region
      $region37: #{bert_mlp_forward.13} parent=31 // pred_check
        %p212 = pneg %p58
      $region38: #{bert_mlp_forward.13} parent=31 // pred_check_branch
        %214 = sbr.rel (%p212) target = $region40
      $region39: #{bert_mlp_forward.13} parent=31 // pred_region
        %p215 = scmp.lt.s32.totalorder %s12, 1
        %s216 = scalar_select %p215, %s12, 1
        %s217 = smul.addr %s216, 8
        %s218 = scalar_lea.vmem %s1, %s217
      $region40: #{bert_mlp_forward.13} parent=31 // pred_fallthru
        _
    $region32: #{bert_mlp_forward.13} parent=5 // pred_fallthru
      _
    %p219 = scmp.le.s32.totalorder 1, %s12
    %p220 = scmp.lt.s32.totalorder %s12, 3
    %p221 = pnand %p219, %p220
    %p222 = pneg %p221
    // Predicated region
    $region41: #{bert_mlp_forward.13} parent=5 // pred_check
      _
    $region42: #{bert_mlp_forward.13} parent=5 // pred_check_branch
      %224 = sbr.rel (%p221) target = $region44
    $region43: #{bert_mlp_forward.13} parent=5 // pred_region
      %s225 = ssub.s32 %s12, 1
      %p226 = scmp.lt.s32.totalorder %s17, 1
      %s227 = scalar_select %p226, %s17, 1
      %s228 = smul.addr %s227, 8
      %s229 = scalar_lea.vmem %s0, %s228
      %p230 = pneg %p38
      %p231 = pneg %p35
      %p232 = scmp.lt.s32.totalorder %s17, 1
      %s233 = scalar_select %p232, %s17, 1
      %s234 = smul.addr %s233, 8
      %s235 = scalar_lea.vmem %s1, %s234
      %p236 = pneg %p64
      %p237 = pneg %p61
      %p238 = pneg %p85
      %p239 = pneg %p82
      %p240 = pneg %p106
      %p241 = pneg %p103
      %p242 = pneg %p127
      %p243 = pneg %p124
      %p244 = pneg %p148
      %p245 = pneg %p145
      %p246 = pneg %p174
      %p247 = pneg %p171
      %p248 = scmp.lt.s32.totalorder %s17, 1
      %s249 = scalar_select %p248, %s17, 1
      %s250 = smul.addr %s249, 8
      %s251 = scalar_lea.vmem %s6, %s250
      %p252 = scmp.lt.s32.totalorder %s17, 1
      %s253 = scalar_select %p252, %s17, 1
      %s254 = smul.addr %s253, 8
      %s255 = scalar_lea.vmem %s0, %s254
      %p256 = scmp.lt.s32.totalorder %s17, 1
      %s257 = scalar_select %p256, %s17, 1
      %s258 = smul.addr %s257, 8
      %s259 = scalar_lea.vmem %s1, %s258
      %p260 = scmp.lt.s32.totalorder %s17, 1
      %s261 = scalar_select %p260, %s17, 1
      %s262 = smul.addr %s261, 8
      %s263 = scalar_lea.vmem %s6, %s262
      %v265 = vld [vmem:[%s255] sm:$0xff]
      %v266 = vpack.c.bf16 %v265, %v265
      %v267 = vld [vmem:[%s2] sm:$0xf]
      %v268 = vld [vmem:[%s2 + $0x4] sm:$0xf]
      %v269 = vld [vmem:[%s2 + $0x8] sm:$0xf]
      %v270 = vld [vmem:[%s2 + $0xc] sm:$0xf]
      %v271 = vld [vmem:[%s2 + $0x10] sm:$0xf]
      %v272 = vld [vmem:[%s2 + $0x14] sm:$0xf]
      %v273 = vld [vmem:[%s2 + $0x18] sm:$0xf]
      %v274 = vld [vmem:[%s2 + $0x1c] sm:$0xf]
      %v275 = vld [vmem:[%s3] sm:$0x1]
      %v277 = vlaneseq
      %v278 = vshrl.u32 %v277, 7
      %v279 = vsub.s32 0, %v278
      %v280 = vrot.slane %v275, %v279
      %v290 = vunpack.c.l.b16 %v267
      %v291 = vunpack.c.l.b16 %v268
      %v292 = vunpack.c.l.b16 %v269
      %v293 = vunpack.c.l.b16 %v270
      %v294 = vunpack.c.l.b16 %v271
      %v295 = vunpack.c.l.b16 %v272
      %v296 = vunpack.c.l.b16 %v273
      %v297 = vunpack.c.l.b16 %v274
      %v298 = vpack.c.b16 %v291, %v290
      %v299 = vpack.c.b16 %v293, %v292
      %v300 = vpack.c.b16 %v295, %v294
      %v301 = vpack.c.b16 %v297, %v296
      %vm306 = vcmask 523264
      %v308 = vsel %vm306, %v266, 0
      %310 = vmatprep.subr.bf16.mxu0 0
      %311 = vmatpush1.bf16.msra.mxu0 0
      %312 = vmatprep.subr.bf16.mxu0 0
      %313 = vmatpush1.bf16.msra.mxu0 0
      %314 = vmatprep.subr.bf16.mxu0 0
      %315 = vmatpush1.bf16.msra.mxu0 0
      %316 = vmatprep.subr.bf16.mxu0 0
      %317 = vmatpush1.bf16.msra.mxu0 0
      %318 = vmatprep.subr.bf16.mxu0 0
      %319 = vmatpush1.bf16.msra.mxu0 %v301
      %320 = vmatprep.subr.bf16.mxu0 0
      %321 = vmatpush1.bf16.msra.mxu0 %v300
      %322 = vmatprep.subr.bf16.mxu0 0
      %323 = vmatpush1.bf16.msra.mxu0 %v299
      %324 = vmatprep.subr.bf16.mxu0 0
      %325 = vmatpush1.bf16.msra.mxu0 %v298
      %326 = vmatprep.subr.bf16.mxu0 0
      %327 = vmatpush2.bf16.msra.mxu0 0
      %328 = vmatprep.subr.bf16.mxu0 0
      %329 = vmatpush2.bf16.msra.mxu0 0
      %330 = vmatprep.subr.bf16.mxu0 0
      %331 = vmatpush2.bf16.msra.mxu0 0
      %332 = vmatprep.subr.bf16.mxu0 0
      %333 = vmatpush2.bf16.msra.mxu0 0
      %334 = vmatprep.subr.bf16.mxu0 0
      %335 = vmatpush2.bf16.msra.mxu0 0
      %336 = vmatprep.subr.bf16.mxu0 0
      %337 = vmatpush2.bf16.msra.mxu0 0
      %338 = vmatprep.subr.bf16.mxu0 0
      %339 = vmatpush2.bf16.msra.mxu0 0
      %340 = vmatprep.subr.bf16.mxu0 0
      %341 = vmatpush2.bf16.msra.mxu0 0
      %342 = vmatprep.mubr.bf16.mxu0 0
      %343 = vmatmul.mubr.bf16.gmra.mxu0 %v308
      %v344 = vpop.f32.mrf.mxu0
      %v345 = vadd.f32 %v280, %v344
      %v346 = vpop.f32.mrf.mxu0
      %v347 = vpop.f32.mrf.mxu0
      %v348 = vpop.f32.mrf.mxu0
      %349 = vdwg.mxu0
      %v350 = vld [vmem:[%s259] sm:$0xff]
      %v351 = vadd.f32 %v345, %v350
      %v352 = vsel %vm306, %v351, 0.0
      %353 = vadd.xlane.f32.xlu0 %v352
      %v354 = vpop.xlane.xlu0 %353
      %v355 = vrcp.pop 64.0
      %v356 = vmul.f32 %v354, %v355
      %v357 = vsub.f32 %v351, %v356
      %v358 = vmul.f32 %v357, %v357
      %v359 = vsel %vm306, %v358, 0.0
      %360 = vadd.xlane.f32.xlu0 %v359
      %v361 = vpop.xlane.xlu0 %360
      %v362 = vmul.f32 %v361, %v355
      %v363 = vadd.f32 %v362, 1e-12
      %v364 = vrsqrt.pop %v363
      %v365 = vmul.f32 %v357, %v364
      %v366 = vld [vmem:[%s4] sm:$0x1]
      %v368 = vlaneseq
      %v369 = vshrl.u32 %v368, 7
      %v370 = vsub.s32 0, %v369
      %v371 = vrot.slane %v366, %v370
      %v373 = vmul.f32 %v365, %v371
      %v374 = vld [vmem:[%s5] sm:$0x1]
      %v376 = vlaneseq
      %v377 = vshrl.u32 %v376, 7
      %v378 = vsub.s32 0, %v377
      %v379 = vrot.slane %v374, %v378
      %v381 = vadd.f32 %v373, %v379
      %382 = vst.msk [vmem:[%s263] sm:$0xff] %vm306, %v381
      %p383 = scmp.lt.s32.totalorder %s17, 1
      %s384 = scalar_select %p383, %s17, 1
      %s385 = smul.addr %s384, 8
      %s386 = scalar_lea.vmem %s6, %s385
      // Predicated region
      $region45: #{bert_mlp_forward.13} parent=43 // pred_check
        %p387 = pneg %p171
      $region46: #{bert_mlp_forward.13} parent=43 // pred_check_branch
        %389 = sbr.rel (%p387) target = $region48
      $region47: #{bert_mlp_forward.13} parent=43 // pred_region
        _
      $region48: #{bert_mlp_forward.13} parent=43 // pred_fallthru
        _
    $region44: #{bert_mlp_forward.13} parent=5 // pred_fallthru
      _
    %p390 = scmp.le.s32.totalorder 2, %s12
    // Predicated region
    $region49: #{bert_mlp_forward.13} parent=5 // pred_check
      %p391 = pneg %p390
    $region50: #{bert_mlp_forward.13} parent=5 // pred_check_branch
      %393 = sbr.rel (%p391) target = $region52
    $region51: #{bert_mlp_forward.13} parent=5 // pred_region
      %s394 = ssub.s32 %s12, 2
      // Predicated region
      $region53: #{bert_mlp_forward.13} parent=51 // pred_check
        %p395 = pneg %p177
      $region54: #{bert_mlp_forward.13} parent=51 // pred_check_branch
        %397 = sbr.rel (%p395) target = $region56
      $region55: #{bert_mlp_forward.13} parent=51 // pred_region
        %p398 = scmp.lt.s32.totalorder %s18, 1
        %s399 = scalar_select %p398, %s18, 1
        %s400 = smul.addr %s399, 8
        %s401 = scalar_lea.vmem %s6, %s400
      $region56: #{bert_mlp_forward.13} parent=51 // pred_fallthru
        _
    $region52: #{bert_mlp_forward.13} parent=5 // pred_fallthru
      _
  $region6: #{bert_mlp_forward.13} parent=0 // loop_footer
    %s16 = sadd.s32 1, %s12
  $region7: #{bert_mlp_forward.13} parent=0 // loop_footer_branch
    %11 = sbr.rel target = $region3
  $region8: #{bert_mlp_forward.13} parent=0 // loop_exit
    _

// kernel: bert_mlp_forward.19
$region0: #{bert_mlp_forward.19}
  #allocation0 [shape = 'u32[]', space=smem, size = 0x4, offset = 0x4, fixed_abs, tag = 'smem constant byte address 0x4 - core index']
  #allocation1 [shape = 'u32[144,128]{1,0:T(1,128)}', space=vmem, size = 0x12000, scoped, tag = 'internal scratch']
  %s0 = inlined_call_operand.vmem [shape: f32[2,64], index: 0, kind: input, shape index: {}]
  %s1 = inlined_call_operand.vmem [shape: bf16[64,256], index: 1, kind: input, shape index: {}]
  %s2 = inlined_call_operand.vmem [shape: f32[1,256], index: 2, kind: input, shape index: {}]
  %s3 = inlined_call_operand.vmem [shape: bf16[256,10], index: 3, kind: input, shape index: {}]
  %s4 = inlined_call_operand.vmem [shape: f32[1,10], index: 4, kind: input, shape index: {}]
  %s5 = inlined_call_operand.hbm [shape: f32[2,10], index: 5, kind: output, shape index: {}]
  %s6 = sld [smem:[#allocation0]]
  $region30: #{bert_mlp_forward.19} parent=0
    _
  %s8 = ssub.s32 1, %s6
  %s9 = scalar_select 0, %s8, %s6
  $region1: #{bert_mlp_forward.19} parent=0
    #allocation2 [shape = 'u8[1024]{0}', space=vmem, size = 0x400, scoped, tag = 'output window, operand 0, single buffered']
    #allocation3 [shape = 's32[1]{0}', space=sflag, size = 0x4, scoped, tag = 'scoped memory for bert_mlp_forward.19']
    %10 = vsyncpa [#allocation3], 0
    // Predicated region
    $region2: #{bert_mlp_forward.19} parent=1 // pred_check
      _
    $region3: #{bert_mlp_forward.19} parent=1 // pred_check_branch
      %12 = sbr.rel (0) target = $region5
    $region4: #{bert_mlp_forward.19} parent=1 // pred_region
      _
    $region5: #{bert_mlp_forward.19} parent=1 // pred_fallthru
      _
    // Predicated region
    $region6: #{bert_mlp_forward.19} parent=1 // pred_check
      _
    $region7: #{bert_mlp_forward.19} parent=1 // pred_check_branch
      %14 = sbr.rel (0) target = $region9
    $region8: #{bert_mlp_forward.19} parent=1 // pred_region
      _
    $region9: #{bert_mlp_forward.19} parent=1 // pred_fallthru
      _
    // Predicated region
    $region10: #{bert_mlp_forward.19} parent=1 // pred_check
      _
    $region11: #{bert_mlp_forward.19} parent=1 // pred_check_branch
      %16 = sbr.rel (0) target = $region13
    $region12: #{bert_mlp_forward.19} parent=1 // pred_region
      _
    $region13: #{bert_mlp_forward.19} parent=1 // pred_fallthru
      _
    // Predicated region
    $region14: #{bert_mlp_forward.19} parent=1 // pred_check
      _
    $region15: #{bert_mlp_forward.19} parent=1 // pred_check_branch
      %18 = sbr.rel (0) target = $region17
    $region16: #{bert_mlp_forward.19} parent=1 // pred_region
      _
    $region17: #{bert_mlp_forward.19} parent=1 // pred_fallthru
      _
    // Predicated region
    $region18: #{bert_mlp_forward.19} parent=1 // pred_check
      _
    $region19: #{bert_mlp_forward.19} parent=1 // pred_check_branch
      %20 = sbr.rel (0) target = $region21
    $region20: #{bert_mlp_forward.19} parent=1 // pred_region
      _
    $region21: #{bert_mlp_forward.19} parent=1 // pred_fallthru
      _
    %v22 = vld [vmem:[%s0] sm:$0x3]
    %v23 = vpack.c.bf16 %v22, %v22
    %v24 = vld [vmem:[%s1] sm:$0xff]
    %v25 = vld [vmem:[%s1 + $0x8] sm:$0xff]
    %v26 = vld [vmem:[%s1 + $0x10] sm:$0xff]
    %v27 = vld [vmem:[%s1 + $0x18] sm:$0xff]
    %v28 = vld [vmem:[%s1 + $0x20] sm:$0xff]
    %v29 = vld [vmem:[%s1 + $0x28] sm:$0xff]
    %v30 = vld [vmem:[%s1 + $0x30] sm:$0xff]
    %v31 = vld [vmem:[%s1 + $0x38] sm:$0xff]
    %v32 = vld [vmem:[%s2] sm:$0x3]
    %v34 = vlaneseq
    %v35 = vshrl.u32 %v34, 7
    %v36 = vsub.s32 0, %v35
    %v37 = vrot.slane %v32, %v36
    %v38 = vlaneseq
    %v39 = vshrl.u32 %v38, 7
    %v40 = vsub.s32 1, %v39
    %v41 = vrot.slane %v32, %v40
    %v52 = vunpack.c.l.b16 %v24
    %v53 = vunpack.c.h.b16 %v24
    %v54 = vunpack.c.l.b16 %v25
    %v55 = vunpack.c.h.b16 %v25
    %v56 = vunpack.c.l.b16 %v26
    %v57 = vunpack.c.h.b16 %v26
    %v58 = vunpack.c.l.b16 %v27
    %v59 = vunpack.c.h.b16 %v27
    %v60 = vunpack.c.l.b16 %v28
    %v61 = vunpack.c.h.b16 %v28
    %v62 = vunpack.c.l.b16 %v29
    %v63 = vunpack.c.h.b16 %v29
    %v64 = vunpack.c.l.b16 %v30
    %v65 = vunpack.c.h.b16 %v30
    %v66 = vunpack.c.l.b16 %v31
    %v67 = vunpack.c.h.b16 %v31
    %v68 = vpack.c.b16 %v54, %v52
    %v69 = vpack.c.b16 %v55, %v53
    %v70 = vpack.c.b16 %v58, %v56
    %v71 = vpack.c.b16 %v59, %v57
    %v72 = vpack.c.b16 %v62, %v60
    %v73 = vpack.c.b16 %v63, %v61
    %v74 = vpack.c.b16 %v66, %v64
    %v75 = vpack.c.b16 %v67, %v65
    %vm84 = vcmask 523264
    %v86 = vsel %vm84, %v23, 0
    %88 = vmatprep.subr.bf16.mxu0 0
    %89 = vmatpush1.bf16.msra.mxu0 0
    %90 = vmatprep.subr.bf16.mxu0 0
    %91 = vmatpush1.bf16.msra.mxu0 0
    %92 = vmatprep.subr.bf16.mxu0 0
    %93 = vmatpush1.bf16.msra.mxu0 0
    %94 = vmatprep.subr.bf16.mxu0 0
    %95 = vmatpush1.bf16.msra.mxu0 0
    %96 = vmatprep.subr.bf16.mxu0 %v75
    %97 = vmatpush1.bf16.msra.mxu0 %v74
    %98 = vmatprep.subr.bf16.mxu0 %v73
    %99 = vmatpush1.bf16.msra.mxu0 %v72
    %100 = vmatprep.subr.bf16.mxu0 %v71
    %101 = vmatpush1.bf16.msra.mxu0 %v70
    %102 = vmatprep.subr.bf16.mxu0 %v69
    %103 = vmatpush1.bf16.msra.mxu0 %v68
    %104 = vmatprep.subr.bf16.mxu0 0
    %105 = vmatpush2.bf16.msra.mxu0 0
    %106 = vmatprep.subr.bf16.mxu0 0
    %107 = vmatpush2.bf16.msra.mxu0 0
    %108 = vmatprep.subr.bf16.mxu0 0
    %109 = vmatpush2.bf16.msra.mxu0 0
    %110 = vmatprep.subr.bf16.mxu0 0
    %111 = vmatpush2.bf16.msra.mxu0 0
    %112 = vmatprep.subr.bf16.mxu0 0
    %113 = vmatpush2.bf16.msra.mxu0 0
    %114 = vmatprep.subr.bf16.mxu0 0
    %115 = vmatpush2.bf16.msra.mxu0 0
    %116 = vmatprep.subr.bf16.mxu0 0
    %117 = vmatpush2.bf16.msra.mxu0 0
    %118 = vmatprep.subr.bf16.mxu0 0
    %119 = vmatpush2.bf16.msra.mxu0 0
    %120 = vmatprep.mubr.bf16.mxu0 0
    %121 = vmatmul.mubr.bf16.gmra.mxu0 %v86
    %v122 = vpop.f32.mrf.mxu0
    %v123 = vadd.f32 %v37, %v122
    %v124 = vpop.f32.mrf.mxu0
    %v125 = vadd.f32 %v41, %v124
    %v126 = vpop.f32.mrf.mxu0
    %v127 = vpop.f32.mrf.mxu0
    %128 = vdwg.mxu0
    %v129 = vmax.f32 %v123, 0.0
    %v130 = vmax.f32 %v125, 0.0
    %v131 = vpack.c.bf16 %v129, %v129
    %v132 = vpack.c.bf16 %v130, %v130
    %v133 = vld [vmem:[%s3] sm:$0xf]
    %v134 = vld [vmem:[%s3 + $0x4] sm:$0xf]
    %v135 = vld [vmem:[%s3 + $0x8] sm:$0xf]
    %v136 = vld [vmem:[%s3 + $0xc] sm:$0xf]
    %v137 = vld [vmem:[%s3 + $0x10] sm:$0xf]
    %v138 = vld [vmem:[%s3 + $0x14] sm:$0xf]
    %v139 = vld [vmem:[%s3 + $0x18] sm:$0xf]
    %v140 = vld [vmem:[%s3 + $0x1c] sm:$0xf]
    %v141 = vld [vmem:[%s3 + $0x20] sm:$0xf]
    %v142 = vld [vmem:[%s3 + $0x24] sm:$0xf]
    %v143 = vld [vmem:[%s3 + $0x28] sm:$0xf]
    %v144 = vld [vmem:[%s3 + $0x2c] sm:$0xf]
    %v145 = vld [vmem:[%s3 + $0x30] sm:$0xf]
    %v146 = vld [vmem:[%s3 + $0x34] sm:$0xf]
    %v147 = vld [vmem:[%s3 + $0x38] sm:$0xf]
    %v148 = vld [vmem:[%s3 + $0x3c] sm:$0xf]
    %v149 = vld [vmem:[%s3 + $0x40] sm:$0xf]
    %v150 = vld [vmem:[%s3 + $0x44] sm:$0xf]
    %v151 = vld [vmem:[%s3 + $0x48] sm:$0xf]
    %v152 = vld [vmem:[%s3 + $0x4c] sm:$0xf]
    %v153 = vld [vmem:[%s3 + $0x50] sm:$0xf]
    %v154 = vld [vmem:[%s3 + $0x54] sm:$0xf]
    %v155 = vld [vmem:[%s3 + $0x58] sm:$0xf]
    %v156 = vld [vmem:[%s3 + $0x5c] sm:$0xf]
    %v157 = vld [vmem:[%s3 + $0x60] sm:$0xf]
    %v158 = vld [vmem:[%s3 + $0x64] sm:$0xf]
    %v159 = vld [vmem:[%s3 + $0x68] sm:$0xf]
    %v160 = vld [vmem:[%s3 + $0x6c] sm:$0xf]
    %v161 = vld [vmem:[%s3 + $0x70] sm:$0xf]
    %v162 = vld [vmem:[%s3 + $0x74] sm:$0xf]
    %v163 = vld [vmem:[%s3 + $0x78] sm:$0xf]
    %v164 = vld [vmem:[%s3 + $0x7c] sm:$0xf]
    %v165 = vld [vmem:[%s4] sm:$0x1]
    %v167 = vlaneseq
    %v168 = vshrl.u32 %v167, 7
    %v169 = vsub.s32 0, %v168
    %v170 = vrot.slane %v165, %v169
    %v204 = vunpack.c.l.b16 %v133
    %v205 = vunpack.c.l.b16 %v134
    %v206 = vunpack.c.l.b16 %v135
    %v207 = vunpack.c.l.b16 %v136
    %v208 = vunpack.c.l.b16 %v137
    %v209 = vunpack.c.l.b16 %v138
    %v210 = vunpack.c.l.b16 %v139
    %v211 = vunpack.c.l.b16 %v140
    %v212 = vunpack.c.l.b16 %v141
    %v213 = vunpack.c.l.b16 %v142
    %v214 = vunpack.c.l.b16 %v143
    %v215 = vunpack.c.l.b16 %v144
    %v216 = vunpack.c.l.b16 %v145
    %v217 = vunpack.c.l.b16 %v146
    %v218 = vunpack.c.l.b16 %v147
    %v219 = vunpack.c.l.b16 %v148
    %v220 = vunpack.c.l.b16 %v149
    %v221 = vunpack.c.l.b16 %v150
    %v222 = vunpack.c.l.b16 %v151
    %v223 = vunpack.c.l.b16 %v152
    %v224 = vunpack.c.l.b16 %v153
    %v225 = vunpack.c.l.b16 %v154
    %v226 = vunpack.c.l.b16 %v155
    %v227 = vunpack.c.l.b16 %v156
    %v228 = vunpack.c.l.b16 %v157
    %v229 = vunpack.c.l.b16 %v158
    %v230 = vunpack.c.l.b16 %v159
    %v231 = vunpack.c.l.b16 %v160
    %v232 = vunpack.c.l.b16 %v161
    %v233 = vunpack.c.l.b16 %v162
    %v234 = vunpack.c.l.b16 %v163
    %v235 = vunpack.c.l.b16 %v164
    %v236 = vpack.c.b16 %v205, %v204
    %v237 = vpack.c.b16 %v207, %v206
    %v238 = vpack.c.b16 %v209, %v208
    %v239 = vpack.c.b16 %v211, %v210
    %v240 = vpack.c.b16 %v213, %v212
    %v241 = vpack.c.b16 %v215, %v214
    %v242 = vpack.c.b16 %v217, %v216
    %v243 = vpack.c.b16 %v219, %v218
    %v244 = vpack.c.b16 %v221, %v220
    %v245 = vpack.c.b16 %v223, %v222
    %v246 = vpack.c.b16 %v225, %v224
    %v247 = vpack.c.b16 %v227, %v226
    %v248 = vpack.c.b16 %v229, %v228
    %v249 = vpack.c.b16 %v231, %v230
    %v250 = vpack.c.b16 %v233, %v232
    %v251 = vpack.c.b16 %v235, %v234
    %268 = vmatprep.subr.bf16.mxu0 0
    %269 = vmatpush1.bf16.msra.mxu0 %v243
    %270 = vmatprep.subr.bf16.mxu0 0
    %271 = vmatpush1.bf16.msra.mxu0 %v242
    %272 = vmatprep.subr.bf16.mxu0 0
    %273 = vmatpush1.bf16.msra.mxu0 %v241
    %274 = vmatprep.subr.bf16.mxu0 0
    %275 = vmatpush1.bf16.msra.mxu0 %v240
    %276 = vmatprep.subr.bf16.mxu0 0
    %277 = vmatpush1.bf16.msra.mxu0 %v239
    %278 = vmatprep.subr.bf16.mxu0 0
    %279 = vmatpush1.bf16.msra.mxu0 %v238
    %280 = vmatprep.subr.bf16.mxu0 0
    %281 = vmatpush1.bf16.msra.mxu0 %v237
    %282 = vmatprep.subr.bf16.mxu0 0
    %283 = vmatpush1.bf16.msra.mxu0 %v236
    %284 = vmatprep.subr.bf16.mxu0 0
    %285 = vmatpush2.bf16.msra.mxu0 %v251
    %286 = vmatprep.subr.bf16.mxu0 0
    %287 = vmatpush2.bf16.msra.mxu0 %v250
    %288 = vmatprep.subr.bf16.mxu0 0
    %289 = vmatpush2.bf16.msra.mxu0 %v249
    %290 = vmatprep.subr.bf16.mxu0 0
    %291 = vmatpush2.bf16.msra.mxu0 %v248
    %292 = vmatprep.subr.bf16.mxu0 0
    %293 = vmatpush2.bf16.msra.mxu0 %v247
    %294 = vmatprep.subr.bf16.mxu0 0
    %295 = vmatpush2.bf16.msra.mxu0 %v246
    %296 = vmatprep.subr.bf16.mxu0 0
    %297 = vmatpush2.bf16.msra.mxu0 %v245
    %298 = vmatprep.subr.bf16.mxu0 0
    %299 = vmatpush2.bf16.msra.mxu0 %v244
    %300 = vmatprep.mubr.bf16.mxu0 %v132
    %301 = vmatmul.mubr.bf16.gmra.mxu0 %v131
    %v302 = vpop.f32.mrf.mxu0
    %v303 = vadd.f32 %v170, %v302
    %v304 = vpop.f32.mrf.mxu0
    %v305 = vpop.f32.mrf.mxu0
    %v306 = vpop.f32.mrf.mxu0
    %307 = vdwg.mxu0
    %vm308 = vcmask 74752
    %309 = vst.msk [vmem:[#allocation2] sm:$0x3] %vm308, %v303
    // Predicated region
    $region22: #{bert_mlp_forward.19} parent=1 // pred_check
      _
    $region23: #{bert_mlp_forward.19} parent=1 // pred_check_branch
      %311 = sbr.rel (0) target = $region25
    $region24: #{bert_mlp_forward.19} parent=1 // pred_region
      %s313 = ssub.s32 32, 32
      %314 = vsyncadd [#allocation3], %s313
      %s316 = sshll.u32 [#allocation2], 4
      %s317 = int_to_ptr.vmem [resolvable:$true] %s316
      %319 = dma.vmem_to_hbm [thread:$0]  %s317, 32, %s5, [#allocation3]
    $region25: #{bert_mlp_forward.19} parent=1 // pred_fallthru
      _
    // Predicated region
    $region26: #{bert_mlp_forward.19} parent=1 // pred_check
      _
    $region27: #{bert_mlp_forward.19} parent=1 // pred_check_branch
      %321 = sbr.rel (0) target = $region29
    $region28: #{bert_mlp_forward.19} parent=1 // pred_region
      %322 = dma.done [#allocation3], 32
    $region29: #{bert_mlp_forward.19} parent=1 // pred_fallthru
      _
    %323 = vsyncpa [#allocation3], 1

// kernel: bert_mlp_forward.14
$region0: #{bert_mlp_forward.14}
  #allocation0 [shape = 'u32[]', space=smem, size = 0x4, offset = 0x4, fixed_abs, tag = 'smem constant byte address 0x4 - core index']
  #allocation1 [shape = 'u32[144,128]{1,0:T(1,128)}', space=vmem, size = 0x12000, scoped, tag = 'internal scratch']
  %s0 = inlined_call_operand.vmem [shape: f32[16,64], index: 0, kind: input, shape index: {}]
  %s1 = inlined_call_operand.vmem [shape: bf16[64,128], index: 1, kind: input, shape index: {}]
  %s2 = inlined_call_operand.vmem [shape: f32[1,128], index: 2, kind: input, shape index: {}]
  %s3 = inlined_call_operand.vmem [shape: bf16[128,64], index: 3, kind: input, shape index: {}]
  %s4 = inlined_call_operand.vmem [shape: f32[1,64], index: 4, kind: input, shape index: {}]
  %s5 = inlined_call_operand.vmem [shape: f32[1,64], index: 5, kind: input, shape index: {}]
  %s6 = inlined_call_operand.vmem [shape: f32[1,64], index: 6, kind: input, shape index: {}]
  %s7 = inlined_call_operand.vmem [shape: f32[16,64], index: 7, kind: output, shape index: {}]
  %s8 = sld [smem:[#allocation0]]
  $region61: #{bert_mlp_forward.14} parent=0
    _
  %s10 = ssub.s32 1, %s8
  %s11 = scalar_select 0, %s10, %s8
  loop: start=0, step=1, limit=4
  $region2: #{bert_mlp_forward.14} parent=0 // loop_pre_header
    _
  $region3: #{bert_mlp_forward.14} parent=0 // loop_header
    %s13 = sphi 0, %s17
    %p14 = scmp.ge.s32.totalorder %s13, 4
    %s23 = sphi 0, %s25
    %s26 = sphi 0, %s23
    %s27 = sphi 0, %s26
    %s43 = sphi 0, %s27
    %s47 = sphi 0, %s47
    %s49 = sphi 0, %s47
    %s50 = sphi 0, %s49
    %s64 = sphi 0, %s50
    %s68 = sphi 0, %s68
    %s70 = sphi 0, %s68
    %s71 = sphi 0, %s70
    %s85 = sphi 0, %s71
    %s89 = sphi 0, %s89
    %s91 = sphi 0, %s89
    %s92 = sphi 0, %s91
    %s106 = sphi 0, %s92
    %s110 = sphi 0, %s110
    %s112 = sphi 0, %s110
    %s113 = sphi 0, %s112
    %s127 = sphi 0, %s113
    %s131 = sphi 0, %s131
    %s133 = sphi 0, %s131
    %s134 = sphi 0, %s133
    %s148 = sphi 0, %s134
    %s152 = sphi 0, %s152
    %s154 = sphi 0, %s152
    %s155 = sphi 0, %s154
    %s169 = sphi 0, %s155
    %s175 = sphi 0, %s177
    %s178 = sphi 0, %s175
    %s179 = sphi 0, %s178
    %s195 = sphi 0, %s179
  $region4: #{bert_mlp_forward.14} parent=0 // loop_header_branch
    %16 = sbr.rel (%p14) target = $region8
  $region5: #{bert_mlp_forward.14} parent=0 // loop_body
    %s18 = ssub.s32 %s13, 1
    %s19 = ssub.s32 %s13, 2
    %s20 = sadd.s32 %s13, 1
    %s21 = ssub.s32 %s13, %s20
    %p22 = scmp.eq.s32.totalorder %s21, 0
    %s24 = sadd.s32 %s23, 1
    %s25 = scalar_select %p22, %s23, %s24
    %p28 = pneg %p22
    %p29 = scmp.eq.s32.totalorder %s13, 1
    %p30 = por %p28, %p29
    %p31 = scmp.ne.s32.totalorder %s23, %s26
    %p32 = scmp.eq.s32.totalorder %s13, 0
    %p33 = por %p31, %p32
    %p34 = scmp.ne.s32.totalorder %s23, %s26
    %p35 = scmp.eq.s32.totalorder %s18, 1
    %p36 = por %p34, %p35
    %p37 = scmp.ne.s32.totalorder %s26, %s27
    %p38 = scmp.eq.s32.totalorder %s18, 0
    %p39 = por %p37, %p38
    %p40 = scmp.ne.s32.totalorder %s26, %s27
    %p41 = scmp.eq.s32.totalorder %s19, 1
    %p42 = por %p40, %p41
    %p44 = scmp.ne.s32.totalorder %s27, %s43
    %p45 = scmp.eq.s32.totalorder %s19, 0
    %p46 = por %p44, %p45
    %s48 = sadd.s32 %s47, 1
    %p51 = scmp.eq.s32.totalorder %s13, 1
    %p52 = scmp.ne.s32.totalorder %s47, %s49
    %p53 = scmp.eq.s32.totalorder %s13, 0
    %p54 = por %p52, %p53
    %p55 = scmp.ne.s32.totalorder %s47, %s49
    %p56 = scmp.eq.s32.totalorder %s18, 1
    %p57 = por %p55, %p56
    %p58 = scmp.ne.s32.totalorder %s49, %s50
    %p59 = scmp.eq.s32.totalorder %s18, 0
    %p60 = por %p58, %p59
    %p61 = scmp.ne.s32.totalorder %s49, %s50
    %p62 = scmp.eq.s32.totalorder %s19, 1
    %p63 = por %p61, %p62
    %p65 = scmp.ne.s32.totalorder %s50, %s64
    %p66 = scmp.eq.s32.totalorder %s19, 0
    %p67 = por %p65, %p66
    %s69 = sadd.s32 %s68, 1
    %p72 = scmp.eq.s32.totalorder %s13, 1
    %p73 = scmp.ne.s32.totalorder %s68, %s70
    %p74 = scmp.eq.s32.totalorder %s13, 0
    %p75 = por %p73, %p74
    %p76 = scmp.ne.s32.totalorder %s68, %s70
    %p77 = scmp.eq.s32.totalorder %s18, 1
    %p78 = por %p76, %p77
    %p79 = scmp.ne.s32.totalorder %s70, %s71
    %p80 = scmp.eq.s32.totalorder %s18, 0
    %p81 = por %p79, %p80
    %p82 = scmp.ne.s32.totalorder %s70, %s71
    %p83 = scmp.eq.s32.totalorder %s19, 1
    %p84 = por %p82, %p83
    %p86 = scmp.ne.s32.totalorder %s71, %s85
    %p87 = scmp.eq.s32.totalorder %s19, 0
    %p88 = por %p86, %p87
    %s90 = sadd.s32 %s89, 1
    %p93 = scmp.eq.s32.totalorder %s13, 1
    %p94 = scmp.ne.s32.totalorder %s89, %s91
    %p95 = scmp.eq.s32.totalorder %s13, 0
    %p96 = por %p94, %p95
    %p97 = scmp.ne.s32.totalorder %s89, %s91
    %p98 = scmp.eq.s32.totalorder %s18, 1
    %p99 = por %p97, %p98
    %p100 = scmp.ne.s32.totalorder %s91, %s92
    %p101 = scmp.eq.s32.totalorder %s18, 0
    %p102 = por %p100, %p101
    %p103 = scmp.ne.s32.totalorder %s91, %s92
    %p104 = scmp.eq.s32.totalorder %s19, 1
    %p105 = por %p103, %p104
    %p107 = scmp.ne.s32.totalorder %s92, %s106
    %p108 = scmp.eq.s32.totalorder %s19, 0
    %p109 = por %p107, %p108
    %s111 = sadd.s32 %s110, 1
    %p114 = scmp.eq.s32.totalorder %s13, 1
    %p115 = scmp.ne.s32.totalorder %s110, %s112
    %p116 = scmp.eq.s32.totalorder %s13, 0
    %p117 = por %p115, %p116
    %p118 = scmp.ne.s32.totalorder %s110, %s112
    %p119 = scmp.eq.s32.totalorder %s18, 1
    %p120 = por %p118, %p119
    %p121 = scmp.ne.s32.totalorder %s112, %s113
    %p122 = scmp.eq.s32.totalorder %s18, 0
    %p123 = por %p121, %p122
    %p124 = scmp.ne.s32.totalorder %s112, %s113
    %p125 = scmp.eq.s32.totalorder %s19, 1
    %p126 = por %p124, %p125
    %p128 = scmp.ne.s32.totalorder %s113, %s127
    %p129 = scmp.eq.s32.totalorder %s19, 0
    %p130 = por %p128, %p129
    %s132 = sadd.s32 %s131, 1
    %p135 = scmp.eq.s32.totalorder %s13, 1
    %p136 = scmp.ne.s32.totalorder %s131, %s133
    %p137 = scmp.eq.s32.totalorder %s13, 0
    %p138 = por %p136, %p137
    %p139 = scmp.ne.s32.totalorder %s131, %s133
    %p140 = scmp.eq.s32.totalorder %s18, 1
    %p141 = por %p139, %p140
    %p142 = scmp.ne.s32.totalorder %s133, %s134
    %p143 = scmp.eq.s32.totalorder %s18, 0
    %p144 = por %p142, %p143
    %p145 = scmp.ne.s32.totalorder %s133, %s134
    %p146 = scmp.eq.s32.totalorder %s19, 1
    %p147 = por %p145, %p146
    %p149 = scmp.ne.s32.totalorder %s134, %s148
    %p150 = scmp.eq.s32.totalorder %s19, 0
    %p151 = por %p149, %p150
    %s153 = sadd.s32 %s152, 1
    %p156 = scmp.eq.s32.totalorder %s13, 1
    %p157 = scmp.ne.s32.totalorder %s152, %s154
    %p158 = scmp.eq.s32.totalorder %s13, 0
    %p159 = por %p157, %p158
    %p160 = scmp.ne.s32.totalorder %s152, %s154
    %p161 = scmp.eq.s32.totalorder %s18, 1
    %p162 = por %p160, %p161
    %p163 = scmp.ne.s32.totalorder %s154, %s155
    %p164 = scmp.eq.s32.totalorder %s18, 0
    %p165 = por %p163, %p164
    %p166 = scmp.ne.s32.totalorder %s154, %s155
    %p167 = scmp.eq.s32.totalorder %s19, 1
    %p168 = por %p166, %p167
    %p170 = scmp.ne.s32.totalorder %s155, %s169
    %p171 = scmp.eq.s32.totalorder %s19, 0
    %p172 = por %p170, %p171
    %s173 = ssub.s32 %s13, %s20
    %p174 = scmp.eq.s32.totalorder %s173, 0
    %s176 = sadd.s32 %s175, 1
    %s177 = scalar_select %p174, %s175, %s176
    %p180 = pneg %p174
    %p181 = scmp.eq.s32.totalorder %s13, 1
    %p182 = por %p180, %p181
    %p183 = scmp.ne.s32.totalorder %s175, %s178
    %p184 = scmp.eq.s32.totalorder %s13, 0
    %p185 = por %p183, %p184
    %p186 = scmp.ne.s32.totalorder %s175, %s178
    %p187 = scmp.eq.s32.totalorder %s18, 1
    %p188 = por %p186, %p187
    %p189 = scmp.ne.s32.totalorder %s178, %s179
    %p190 = scmp.eq.s32.totalorder %s18, 0
    %p191 = por %p189, %p190
    %p192 = scmp.ne.s32.totalorder %s178, %s179
    %p193 = scmp.eq.s32.totalorder %s19, 1
    %p194 = por %p192, %p193
    %p196 = scmp.ne.s32.totalorder %s179, %s195
    %p197 = scmp.eq.s32.totalorder %s19, 0
    %p198 = por %p196, %p197
    %p199 = scmp.le.s32.totalorder 1, %s13
    %p200 = scmp.lt.s32.totalorder %s13, 3
    %p201 = pnand %p199, %p200
    %p202 = pneg %p201
    // Predicated region
    $region9: #{bert_mlp_forward.14} parent=5 // pred_check
      _
    $region10: #{bert_mlp_forward.14} parent=5 // pred_check_branch
      %204 = sbr.rel (%p201) target = $region12
    $region11: #{bert_mlp_forward.14} parent=5 // pred_region
      %s205 = ssub.s32 %s13, 1
      // Predicated region
      $region13: #{bert_mlp_forward.14} parent=11 // pred_check
        %p206 = pneg %p60
      $region14: #{bert_mlp_forward.14} parent=11 // pred_check_branch
        %208 = sbr.rel (%p206) target = $region16
      $region15: #{bert_mlp_forward.14} parent=11 // pred_region
        _
      $region16: #{bert_mlp_forward.14} parent=11 // pred_fallthru
        _
      // Predicated region
      $region17: #{bert_mlp_forward.14} parent=11 // pred_check
        %p209 = pneg %p81
      $region18: #{bert_mlp_forward.14} parent=11 // pred_check_branch
        %211 = sbr.rel (%p209) target = $region20
      $region19: #{bert_mlp_forward.14} parent=11 // pred_region
        _
      $region20: #{bert_mlp_forward.14} parent=11 // pred_fallthru
        _
      // Predicated region
      $region21: #{bert_mlp_forward.14} parent=11 // pred_check
        %p212 = pneg %p102
      $region22: #{bert_mlp_forward.14} parent=11 // pred_check_branch
        %214 = sbr.rel (%p212) target = $region24
      $region23: #{bert_mlp_forward.14} parent=11 // pred_region
        _
      $region24: #{bert_mlp_forward.14} parent=11 // pred_fallthru
        _
      // Predicated region
      $region25: #{bert_mlp_forward.14} parent=11 // pred_check
        %p215 = pneg %p123
      $region26: #{bert_mlp_forward.14} parent=11 // pred_check_branch
        %217 = sbr.rel (%p215) target = $region28
      $region27: #{bert_mlp_forward.14} parent=11 // pred_region
        _
      $region28: #{bert_mlp_forward.14} parent=11 // pred_fallthru
        _
      // Predicated region
      $region29: #{bert_mlp_forward.14} parent=11 // pred_check
        %p218 = pneg %p144
      $region30: #{bert_mlp_forward.14} parent=11 // pred_check_branch
        %220 = sbr.rel (%p218) target = $region32
      $region31: #{bert_mlp_forward.14} parent=11 // pred_region
        _
      $region32: #{bert_mlp_forward.14} parent=11 // pred_fallthru
        _
      // Predicated region
      $region33: #{bert_mlp_forward.14} parent=11 // pred_check
        %p221 = pneg %p165
      $region34: #{bert_mlp_forward.14} parent=11 // pred_check_branch
        %223 = sbr.rel (%p221) target = $region36
      $region35: #{bert_mlp_forward.14} parent=11 // pred_region
        _
      $region36: #{bert_mlp_forward.14} parent=11 // pred_fallthru
        _
    $region12: #{bert_mlp_forward.14} parent=5 // pred_fallthru
      _
    %p224 = scmp.lt.s32.totalorder %s13, 2
    // Predicated region
    $region37: #{bert_mlp_forward.14} parent=5 // pred_check
      %p225 = pneg %p224
    $region38: #{bert_mlp_forward.14} parent=5 // pred_check_branch
      %227 = sbr.rel (%p225) target = $region40
    $region39: #{bert_mlp_forward.14} parent=5 // pred_region
      // Predicated region
      $region41: #{bert_mlp_forward.14} parent=39 // pred_check
        %p228 = pneg %p33
      $region42: #{bert_mlp_forward.14} parent=39 // pred_check_branch
        %230 = sbr.rel (%p228) target = $region44
      $region43: #{bert_mlp_forward.14} parent=39 // pred_region
        %p231 = scmp.lt.s32.totalorder %s13, 1
        %s232 = scalar_select %p231, %s13, 1
        %s233 = smul.addr %s232, 8
        %s234 = scalar_lea.vmem %s0, %s233
      $region44: #{bert_mlp_forward.14} parent=39 // pred_fallthru
        _
    $region40: #{bert_mlp_forward.14} parent=5 // pred_fallthru
      _
    %p235 = scmp.le.s32.totalorder 1, %s13
    %p236 = scmp.lt.s32.totalorder %s13, 3
    %p237 = pnand %p235, %p236
    %p238 = pneg %p237
    // Predicated region
    $region45: #{bert_mlp_forward.14} parent=5 // pred_check
      _
    $region46: #{bert_mlp_forward.14} parent=5 // pred_check_branch
      %240 = sbr.rel (%p237) target = $region48
    $region47: #{bert_mlp_forward.14} parent=5 // pred_region
      %s241 = ssub.s32 %s13, 1
      %p242 = scmp.lt.s32.totalorder %s18, 1
      %s243 = scalar_select %p242, %s18, 1
      %s244 = smul.addr %s243, 8
      %s245 = scalar_lea.vmem %s0, %s244
      %p246 = pneg %p39
      %p247 = pneg %p36
      %p248 = pneg %p60
      %p249 = pneg %p57
      %p250 = pneg %p81
      %p251 = pneg %p78
      %p252 = pneg %p102
      %p253 = pneg %p99
      %p254 = pneg %p123
      %p255 = pneg %p120
      %p256 = pneg %p144
      %p257 = pneg %p141
      %p258 = pneg %p165
      %p259 = pneg %p162
      %p260 = pneg %p191
      %p261 = pneg %p188
      %p262 = scmp.lt.s32.totalorder %s18, 1
      %s263 = scalar_select %p262, %s18, 1
      %s264 = smul.addr %s263, 8
      %s265 = scalar_lea.vmem %s7, %s264
      %p266 = scmp.lt.s32.totalorder %s18, 1
      %s267 = scalar_select %p266, %s18, 1
      %s268 = smul.addr %s267, 8
      %s269 = scalar_lea.vmem %s0, %s268
      %p270 = scmp.lt.s32.totalorder %s18, 1
      %s271 = scalar_select %p270, %s18, 1
      %s272 = smul.addr %s271, 8
      %s273 = scalar_lea.vmem %s7, %s272
      %v275 = vld [vmem:[%s269] sm:$0xff]
      %v276 = vpack.c.bf16 %v275, %v275
      %v277 = vld [vmem:[%s1] sm:$0xf]
      %v278 = vld [vmem:[%s1 + $0x4] sm:$0xf]
      %v279 = vld [vmem:[%s1 + $0x8] sm:$0xf]
      %v280 = vld [vmem:[%s1 + $0xc] sm:$0xf]
      %v281 = vld [vmem:[%s1 + $0x10] sm:$0xf]
      %v282 = vld [vmem:[%s1 + $0x14] sm:$0xf]
      %v283 = vld [vmem:[%s1 + $0x18] sm:$0xf]
      %v284 = vld [vmem:[%s1 + $0x1c] sm:$0xf]
      %v285 = vld [vmem:[%s2] sm:$0x1]
      %v287 = vlaneseq
      %v288 = vshrl.u32 %v287, 7
      %v289 = vsub.s32 0, %v288
      %v290 = vrot.slane %v285, %v289
      %v300 = vunpack.c.l.b16 %v277
      %v301 = vunpack.c.l.b16 %v278
      %v302 = vunpack.c.l.b16 %v279
      %v303 = vunpack.c.l.b16 %v280
      %v304 = vunpack.c.l.b16 %v281
      %v305 = vunpack.c.l.b16 %v282
      %v306 = vunpack.c.l.b16 %v283
      %v307 = vunpack.c.l.b16 %v284
      %v308 = vpack.c.b16 %v301, %v300
      %v309 = vpack.c.b16 %v303, %v302
      %v310 = vpack.c.b16 %v305, %v304
      %v311 = vpack.c.b16 %v307, %v306
      %vm316 = vcmask 523264
      %v318 = vsel %vm316, %v276, 0
      %320 = vmatprep.subr.bf16.mxu0 0
      %321 = vmatpush1.bf16.msra.mxu0 0
      %322 = vmatprep.subr.bf16.mxu0 0
      %323 = vmatpush1.bf16.msra.mxu0 0
      %324 = vmatprep.subr.bf16.mxu0 0
      %325 = vmatpush1.bf16.msra.mxu0 0
      %326 = vmatprep.subr.bf16.mxu0 0
      %327 = vmatpush1.bf16.msra.mxu0 0
      %328 = vmatprep.subr.bf16.mxu0 0
      %329 = vmatpush1.bf16.msra.mxu0 %v311
      %330 = vmatprep.subr.bf16.mxu0 0
      %331 = vmatpush1.bf16.msra.mxu0 %v310
      %332 = vmatprep.subr.bf16.mxu0 0
      %333 = vmatpush1.bf16.msra.mxu0 %v309
      %334 = vmatprep.subr.bf16.mxu0 0
      %335 = vmatpush1.bf16.msra.mxu0 %v308
      %336 = vmatprep.subr.bf16.mxu0 0
      %337 = vmatpush2.bf16.msra.mxu0 0
      %338 = vmatprep.subr.bf16.mxu0 0
      %339 = vmatpush2.bf16.msra.mxu0 0
      %340 = vmatprep.subr.bf16.mxu0 0
      %341 = vmatpush2.bf16.msra.mxu0 0
      %342 = vmatprep.subr.bf16.mxu0 0
      %343 = vmatpush2.bf16.msra.mxu0 0
      %344 = vmatprep.subr.bf16.mxu0 0
      %345 = vmatpush2.bf16.msra.mxu0 0
      %346 = vmatprep.subr.bf16.mxu0 0
      %347 = vmatpush2.bf16.msra.mxu0 0
      %348 = vmatprep.subr.bf16.mxu0 0
      %349 = vmatpush2.bf16.msra.mxu0 0
      %350 = vmatprep.subr.bf16.mxu0 0
      %351 = vmatpush2.bf16.msra.mxu0 0
      %352 = vmatprep.mubr.bf16.mxu0 0
      %353 = vmatmul.mubr.bf16.gmra.mxu0 %v318
      %v354 = vpop.f32.mrf.mxu0
      %v355 = vadd.f32 %v290, %v354
      %v356 = vpop.f32.mrf.mxu0
      %v357 = vpop.f32.mrf.mxu0
      %v358 = vpop.f32.mrf.mxu0
      %359 = vdwg.mxu0
      %v360 = vmul.f32 %v355, 0.5
      %v361 = vmul.f32 %v355, 0.044715
      %v362 = vmul.f32 %v361, %v355
      %v363 = vmul.f32 %v362, %v355
      %v364 = vadd.f32 %v355, %v363
      %v365 = vmul.f32 %v364, 0.7978846
      %v366 = vtanh.pop %v365
      %v367 = vadd.f32 %v366, 1.0
      %v368 = vmul.f32 %v360, %v367
      %v369 = vpack.c.bf16 %v368, %v368
      %v370 = vld [vmem:[%s3] sm:$0xf]
      %v371 = vld [vmem:[%s3 + $0x4] sm:$0xf]
      %v372 = vld [vmem:[%s3 + $0x8] sm:$0xf]
      %v373 = vld [vmem:[%s3 + $0xc] sm:$0xf]
      %v374 = vld [vmem:[%s3 + $0x10] sm:$0xf]
      %v375 = vld [vmem:[%s3 + $0x14] sm:$0xf]
      %v376 = vld [vmem:[%s3 + $0x18] sm:$0xf]
      %v377 = vld [vmem:[%s3 + $0x1c] sm:$0xf]
      %v378 = vld [vmem:[%s3 + $0x20] sm:$0xf]
      %v379 = vld [vmem:[%s3 + $0x24] sm:$0xf]
      %v380 = vld [vmem:[%s3 + $0x28] sm:$0xf]
      %v381 = vld [vmem:[%s3 + $0x2c] sm:$0xf]
      %v382 = vld [vmem:[%s3 + $0x30] sm:$0xf]
      %v383 = vld [vmem:[%s3 + $0x34] sm:$0xf]
      %v384 = vld [vmem:[%s3 + $0x38] sm:$0xf]
      %v385 = vld [vmem:[%s3 + $0x3c] sm:$0xf]
      %v386 = vld [vmem:[%s4] sm:$0x1]
      %v388 = vlaneseq
      %v389 = vshrl.u32 %v388, 7
      %v390 = vsub.s32 0, %v389
      %v391 = vrot.slane %v386, %v390
      %v409 = vunpack.c.l.b16 %v370
      %v410 = vunpack.c.l.b16 %v371
      %v411 = vunpack.c.l.b16 %v372
      %v412 = vunpack.c.l.b16 %v373
      %v413 = vunpack.c.l.b16 %v374
      %v414 = vunpack.c.l.b16 %v375
      %v415 = vunpack.c.l.b16 %v376
      %v416 = vunpack.c.l.b16 %v377
      %v417 = vunpack.c.l.b16 %v378
      %v418 = vunpack.c.l.b16 %v379
      %v419 = vunpack.c.l.b16 %v380
      %v420 = vunpack.c.l.b16 %v381
      %v421 = vunpack.c.l.b16 %v382
      %v422 = vunpack.c.l.b16 %v383
      %v423 = vunpack.c.l.b16 %v384
      %v424 = vunpack.c.l.b16 %v385
      %v425 = vpack.c.b16 %v410, %v409
      %v426 = vpack.c.b16 %v412, %v411
      %v427 = vpack.c.b16 %v414, %v413
      %v428 = vpack.c.b16 %v416, %v415
      %v429 = vpack.c.b16 %v418, %v417
      %v430 = vpack.c.b16 %v420, %v419
      %v431 = vpack.c.b16 %v422, %v421
      %v432 = vpack.c.b16 %v424, %v423
      %441 = vmatprep.subr.bf16.mxu0 0
      %442 = vmatpush1.bf16.msra.mxu0 %v432
      %443 = vmatprep.subr.bf16.mxu0 0
      %444 = vmatpush1.bf16.msra.mxu0 %v431
      %445 = vmatprep.subr.bf16.mxu0 0
      %446 = vmatpush1.bf16.msra.mxu0 %v430
      %447 = vmatprep.subr.bf16.mxu0 0
      %448 = vmatpush1.bf16.msra.mxu0 %v429
      %449 = vmatprep.subr.bf16.mxu0 0
      %450 = vmatpush1.bf16.msra.mxu0 %v428
      %451 = vmatprep.subr.bf16.mxu0 0
      %452 = vmatpush1.bf16.msra.mxu0 %v427
      %453 = vmatprep.subr.bf16.mxu0 0
      %454 = vmatpush1.bf16.msra.mxu0 %v426
      %455 = vmatprep.subr.bf16.mxu0 0
      %456 = vmatpush1.bf16.msra.mxu0 %v425
      %457 = vmatprep.subr.bf16.mxu0 0
      %458 = vmatpush2.bf16.msra.mxu0 0
      %459 = vmatprep.subr.bf16.mxu0 0
      %460 = vmatpush2.bf16.msra.mxu0 0
      %461 = vmatprep.subr.bf16.mxu0 0
      %462 = vmatpush2.bf16.msra.mxu0 0
      %463 = vmatprep.subr.bf16.mxu0 0
      %464 = vmatpush2.bf16.msra.mxu0 0
      %465 = vmatprep.subr.bf16.mxu0 0
      %466 = vmatpush2.bf16.msra.mxu0 0
      %467 = vmatprep.subr.bf16.mxu0 0
      %468 = vmatpush2.bf16.msra.mxu0 0
      %469 = vmatprep.subr.bf16.mxu0 0
      %470 = vmatpush2.bf16.msra.mxu0 0
      %471 = vmatprep.subr.bf16.mxu0 0
      %472 = vmatpush2.bf16.msra.mxu0 0
      %473 = vmatprep.mubr.bf16.mxu0 0
      %474 = vmatmul.mubr.bf16.gmra.mxu0 %v369
      %v475 = vpop.f32.mrf.mxu0
      %v476 = vadd.f32 %v391, %v475
      %v477 = vpop.f32.mrf.mxu0
      %v478 = vpop.f32.mrf.mxu0
      %v479 = vpop.f32.mrf.mxu0
      %480 = vdwg.mxu0
      %v481 = vadd.f32 %v476, %v275
      %v482 = vsel %vm316, %v481, 0.0
      %483 = vadd.xlane.f32.xlu0 %v482
      %v484 = vpop.xlane.xlu0 %483
      %v485 = vrcp.pop 64.0
      %v486 = vmul.f32 %v484, %v485
      %v487 = vsub.f32 %v481, %v486
      %v488 = vmul.f32 %v487, %v487
      %v489 = vsel %vm316, %v488, 0.0
      %490 = vadd.xlane.f32.xlu0 %v489
      %v491 = vpop.xlane.xlu0 %490
      %v492 = vmul.f32 %v491, %v485
      %v493 = vadd.f32 %v492, 1e-12
      %v494 = vrsqrt.pop %v493
      %v495 = vmul.f32 %v487, %v494
      %v496 = vld [vmem:[%s5] sm:$0x1]
      %v498 = vlaneseq
      %v499 = vshrl.u32 %v498, 7
      %v500 = vsub.s32 0, %v499
      %v501 = vrot.slane %v496, %v500
      %v503 = vmul.f32 %v495, %v501
      %v504 = vld [vmem:[%s6] sm:$0x1]
      %v506 = vlaneseq
      %v507 = vshrl.u32 %v506, 7
      %v508 = vsub.s32 0, %v507
      %v509 = vrot.slane %v504, %v508
      %v511 = vadd.f32 %v503, %v509
      %512 = vst.msk [vmem:[%s273] sm:$0xff] %vm316, %v511
      %p513 = scmp.lt.s32.totalorder %s18, 1
      %s514 = scalar_select %p513, %s18, 1
      %s515 = smul.addr %s514, 8
      %s516 = scalar_lea.vmem %s7, %s515
      // Predicated region
      $region49: #{bert_mlp_forward.14} parent=47 // pred_check
        %p517 = pneg %p188
      $region50: #{bert_mlp_forward.14} parent=47 // pred_check_branch
        %519 = sbr.rel (%p517) target = $region52
      $region51: #{bert_mlp_forward.14} parent=47 // pred_region
        _
      $region52: #{bert_mlp_forward.14} parent=47 // pred_fallthru
        _
    $region48: #{bert_mlp_forward.14} parent=5 // pred_fallthru
      _
    %p520 = scmp.le.s32.totalorder 2, %s13
    // Predicated region
    $region53: #{bert_mlp_forward.14} parent=5 // pred_check
      %p521 = pneg %p520
    $region54: #{bert_mlp_forward.14} parent=5 // pred_check_branch
      %523 = sbr.rel (%p521) target = $region56
    $region55: #{bert_mlp_forward.14} parent=5 // pred_region
      %s524 = ssub.s32 %s13, 2
      // Predicated region
      $region57: #{bert_mlp_forward.14} parent=55 // pred_check
        %p525 = pneg %p194
      $region58: #{bert_mlp_forward.14} parent=55 // pred_check_branch
        %527 = sbr.rel (%p525) target = $region60
      $region59: #{bert_mlp_forward.14} parent=55 // pred_region
        %p528 = scmp.lt.s32.totalorder %s19, 1
        %s529 = scalar_select %p528, %s19, 1
        %s530 = smul.addr %s529, 8
        %s531 = scalar_lea.vmem %s7, %s530
      $region60: #{bert_mlp_forward.14} parent=55 // pred_fallthru
        _
    $region56: #{bert_mlp_forward.14} parent=5 // pred_fallthru
      _
  $region6: #{bert_mlp_forward.14} parent=0 // loop_footer
    %s17 = sadd.s32 1, %s13
  $region7: #{bert_mlp_forward.14} parent=0 // loop_footer_branch
    %12 = sbr.rel target = $region3
  $region8: #{bert_mlp_forward.14} parent=0 // loop_exit
    _

</llo_original>
